<compile_context>
chip_gen: v5e
topology: v5e:2x2
jax: 0.10.0
libtpu: 0.0.40
codegen_flags: <defaults>
</compile_context>

<pallas_src>
import math
import jax
import jax.numpy as jnp
from jax.experimental import pallas as pl
from jax.experimental.pallas import tpu as pltpu

# ----- small synthetic BERT config (shapes consistent with the module) -----
B = 2            # batch
S = 8            # sequence length (<= 512 in the real model)
H = 32           # hidden size
NH = 4           # attention heads
DH = H // NH     # per-head dim
FF = 4 * H       # intermediate (FFN) size
L = 2            # encoder layers
C = 5            # num_classes
CP = 128         # lane-padded logits width (lane-dense output store)
VOCAB = 100
LN_EPS = 1e-12
BS = B * S

# ---- packed small-parameter slab layout (one f32 [ROWS_PAD, 128] operand) ----
R_EMB_G, R_EMB_B, R_POOL_B, R_FC_B = 0, 1, 2, 3
N_SMALL_PER_LAYER = 8            # bqkv, bo, g1, b1, bi, bf, g2, b2
SMALL_ROWS = 4 + N_SMALL_PER_LAYER * L
SMALL_ROWS_PAD = -(-SMALL_ROWS // 8) * 8
SMALL_W = 128


# ----------------------------- kernel helpers ------------------------------
def _layernorm(x, g, b):
    mu = jnp.mean(x, axis=-1, keepdims=True)
    var = jnp.mean((x - mu) ** 2, axis=-1, keepdims=True)
    return (x - mu) * jax.lax.rsqrt(var + LN_EPS) * g + b


def _gelu(x):
    # tanh-approx GELU (HF BERT uses erf GELU; the two agree to ~1e-3)
    return 0.5 * x * (1.0 + jnp.tanh(0.7978845608028654 * (x + 0.044715 * x * x * x)))


# ------------------------- fully fused model kernel ------------------------
def _bert_fused_kernel(e_ref, mask_ref, small_ref,
                       wqkv_ref, wo_ref, wi_ref, wf_ref, pool_w_ref, fc_w_ref,
                       o_ref):
    scale = 1.0 / math.sqrt(DH)

    # One load of the packed small-parameter slab; all bias/LN params sliced from it.
    small = small_ref[...]                                   # [ROWS_PAD, 128] f32

    # ---- hoisted attention-mask bias: computed ONCE, reused by every layer ----
    mask2 = mask_ref[...]                                    # [B, S] additive bias
    bias_bss = jnp.broadcast_to(mask2[:, None, :], (B, S, S))
    bias_fold = jnp.concatenate([bias_bss] * NH, axis=0)     # [NH*B, S, S] f32

    # ---- embedding LayerNorm (f32) ----
    x = _layernorm(e_ref[...], small[R_EMB_G, :H], small[R_EMB_B, :H])    # [BS, H]

    # ---- L encoder layers, statically unrolled; all weights VMEM-resident ----
    for l in range(L):
        r = 4 + l * N_SMALL_PER_LAYER

        # fused QKV: one [BS,H] @ [H,3H] MXU matmul, bf16 in / f32 accumulate
        x_bf = x.astype(jnp.bfloat16)
        qkv = jnp.dot(x_bf, wqkv_ref[l],
                      preferred_element_type=jnp.float32) + small[r + 0, :3 * H]
        qkv_bf = qkv.astype(jnp.bfloat16)                    # cast once; slice bf16 below

        # fold heads into the batch dim: [BS, 3H] -> three [NH*B, S, DH] tensors
        # (static lane slices + leading-axis concat; no transposes, no scratch stores)
        def fold(base):
            return jnp.concatenate(
                [qkv_bf[:, base + h * DH: base + (h + 1) * DH].reshape(B, S, DH)
                 for h in range(NH)], axis=0)                # index = h*B + b
        q, k, v = fold(0), fold(H), fold(2 * H)

        # ONE pair of batched einsums for all heads; softmax stays f32
        s = jnp.einsum('bqd,bkd->bqk', q, k,
                       preferred_element_type=jnp.float32) * scale + bias_fold
        s = s - jnp.max(s, axis=-1, keepdims=True)
        p = jnp.exp(s)
        p = p * pl.reciprocal(jnp.sum(p, axis=-1, keepdims=True), approx=True)
        ctx = jnp.einsum('bqk,bkd->bqd', p.astype(jnp.bfloat16), v,
                         preferred_element_type=jnp.float32)  # [NH*B, S, DH] f32

        # unfold heads back onto the lane axis (in-register concat, lane-dense)
        ctx = jnp.concatenate([ctx[h * B:(h + 1) * B] for h in range(NH)],
                              axis=-1)                        # [B, S, H]
        ctx = ctx.reshape(BS, H)

        # single output projection over the concatenated heads + residual + LN
        attn = jnp.dot(ctx.astype(jnp.bfloat16), wo_ref[l],
                       preferred_element_type=jnp.float32) + small[r + 1, :H]
        x = _layernorm(x + attn, small[r + 2, :H], small[r + 3, :H])

        # FFN (GELU in f32, matmuls bf16-in / f32-acc) + residual + LN
        h_bf = x.astype(jnp.bfloat16)
        hmid = _gelu(jnp.dot(h_bf, wi_ref[l],
                             preferred_element_type=jnp.float32) + small[r + 4, :FF])
        ffn = jnp.dot(hmid.astype(jnp.bfloat16), wf_ref[l],
                      preferred_element_type=jnp.float32) + small[r + 5, :H]
        x = _layernorm(x + ffn, small[r + 6, :H], small[r + 7, :H])

    # ---- pooler ([CLS] token) + classifier head (epilogue inside the fused kernel) ----
    cls_vec = x.reshape(B, S, H)[:, 0, :]                                  # [B, H]
    pooled = jnp.tanh(jnp.dot(cls_vec.astype(jnp.bfloat16), pool_w_ref[...],
                              preferred_element_type=jnp.float32) + small[R_POOL_B, :H])
    # Dropout(p=0.3) is identity at inference (eval mode).
    o_ref[...] = jnp.dot(pooled.astype(jnp.bfloat16), fc_w_ref[...],
                         preferred_element_type=jnp.float32) + small[R_FC_B, :]   # [B, CP]


def bert_forward_pallas(e_flat, mask_bias, p):
    out = pl.pallas_call(
        _bert_fused_kernel,
        out_shape=jax.ShapeDtypeStruct((B, CP), jnp.float32),
        compiler_params=pltpu.CompilerParams(vmem_limit_bytes=64 * 1024 * 1024),
    )(e_flat, mask_bias, p["small"],
      p["wqkv"], p["wo"], p["wi"], p["wf"], p["pool_w"], p["fc_w"])
    return out[:, :C]                                          # drop lane padding


# ------------------------------ parameter init -----------------------------
def init_params(key):
    def nrm(k, shape, scale=0.02):
        return (scale * jax.random.normal(k, shape)).astype(jnp.float32)

    keys = jax.random.split(key, 9)
    fc_w = jnp.zeros((H, CP), jnp.float32).at[:, :C].set(nrm(keys[4], (H, C)))
    params = {
        "tok_emb": nrm(keys[0], (VOCAB, H)),
        "pos_emb": nrm(keys[1], (S, H)),
        "typ_emb": nrm(keys[2], (2, H)),
        "pool_w": nrm(keys[3], (H, H)).astype(jnp.bfloat16),
        "fc_w": fc_w.astype(jnp.bfloat16),        # lane-padded; cols >= C are zero
        # per-layer MXU weights stacked along a leading L axis, bf16
        "wqkv": nrm(keys[5], (L, H, 3 * H)).astype(jnp.bfloat16),
        "wo": nrm(keys[6], (L, H, H)).astype(jnp.bfloat16),
        "wi": nrm(keys[7], (L, H, FF)).astype(jnp.bfloat16),
        "wf": nrm(keys[8], (L, FF, H)).astype(jnp.bfloat16),
    }
    # packed small-parameter slab: ONE f32 [24,128] operand instead of 12 tiny DMAs.
    # rows: 0 emb_g, 1 emb_b, 2 pool_b, 3 fc_b; per layer l (base 4+8l):
    #       +0 bqkv, +1 bo, +2 g1, +3 b1, +4 bi, +5 bf, +6 g2, +7 b2
    small = jnp.zeros((SMALL_ROWS_PAD, SMALL_W), jnp.float32)
    small = small.at[R_EMB_G, :H].set(1.0)                     # embedding LN gamma
    for l in range(L):
        r = 4 + l * N_SMALL_PER_LAYER
        small = small.at[r + 2, :H].set(1.0)                   # post-attn LN gamma
        small = small.at[r + 6, :H].set(1.0)                   # post-FFN LN gamma
        # all biases / betas stay zero (matches zero-init of the reference)
    params["small"] = small
    return params


# --------------------------------- forward ---------------------------------
def forward(params, input_ids, attention_mask):
    # TODO(synk): BertTokenizer (string -> input_ids) has no Pallas equivalent;
    #             this forward consumes pre-tokenized ids + mask directly.
    tok = params["tok_emb"][input_ids]                 # [B,S,H] gather (host-side glue)
    pos = params["pos_emb"][None, :, :]                # [1,S,H]
    typ = params["typ_emb"][0][None, None, :]          # all token_type_ids == 0
    e_flat = (tok + pos + typ).reshape(BS, H).astype(jnp.float32)
    mask_bias = (1.0 - attention_mask.astype(jnp.float32)) * (-1e9)   # [B,S] additive
    return bert_forward_pallas(e_flat, mask_bias, params)             # [B, num_classes]


if __name__ == "__main__":
    key = jax.random.PRNGKey(0)
    kp, kid = jax.random.split(key)
    params = init_params(kp)

    input_ids = jax.random.randint(kid, (B, S), 0, VOCAB, dtype=jnp.int32)
    attention_mask = jnp.ones((B, S), jnp.float32)     # no padding in this example

    logits = forward(params, input_ids, attention_mask)
    jax.block_until_ready(logits)
    assert logits.shape == (B, C) and logits.dtype == jnp.float32
    assert bool(jnp.all(jnp.isfinite(logits)))
    print("KERNEL_OK")
</pallas_src>

<mosaic_0001>
module attributes {stable_mosaic.version = 11 : i64} {
  func.func @_bert_fused_kernel(%arg0: memref<16x32xf32, #tpu.memory_space<vmem>>, %arg1: memref<2x8xf32, #tpu.memory_space<vmem>>, %arg2: memref<24x128xf32, #tpu.memory_space<vmem>>, %arg3: memref<2x32x96xbf16, #tpu.memory_space<vmem>>, %arg4: memref<2x32x32xbf16, #tpu.memory_space<vmem>>, %arg5: memref<2x32x128xbf16, #tpu.memory_space<vmem>>, %arg6: memref<2x128x32xbf16, #tpu.memory_space<vmem>>, %arg7: memref<32x32xbf16, #tpu.memory_space<vmem>>, %arg8: memref<32x128xbf16, #tpu.memory_space<vmem>>, %arg9: memref<2x128xf32, #tpu.memory_space<vmem>>) attributes {dimension_semantics = [], scalar_prefetch = 0 : i64, scratch_operands = 0 : i64, tpu.core_type = #tpu.core_type<tc>} {
    %c0 = arith.constant 0 : index
    %c0_0 = arith.constant 0 : index
    %0 = vector.load %arg2[%c0, %c0_0] : memref<24x128xf32, #tpu.memory_space<vmem>>, vector<24x128xf32>
    %c0_1 = arith.constant 0 : index
    %c0_2 = arith.constant 0 : index
    %1 = vector.load %arg1[%c0_1, %c0_2] : memref<2x8xf32, #tpu.memory_space<vmem>>, vector<2x8xf32>
    %2 = vector.shape_cast %1 : vector<2x8xf32> to vector<2x1x8xf32>
    %3 = vector.shape_cast %2 : vector<2x1x8xf32> to vector<2x1x8xf32>
    %4 = vector.broadcast %3 : vector<2x1x8xf32> to vector<2x8x8xf32>
    %5 = tpu.concatenate %4, %4, %4, %4 in 0 : vector<2x8x8xf32>, vector<2x8x8xf32>, vector<2x8x8xf32>, vector<2x8x8xf32> -> vector<8x8x8xf32>
    %c0_3 = arith.constant 0 : index
    %c0_4 = arith.constant 0 : index
    %6 = vector.load %arg0[%c0_3, %c0_4] : memref<16x32xf32, #tpu.memory_space<vmem>>, vector<16x32xf32>
    %7 = vector.extract_strided_slice %0 {offsets = [0, 0], sizes = [1, 32], strides = [1, 1]} : vector<24x128xf32> to vector<1x32xf32>
    %8 = vector.shape_cast %7 : vector<1x32xf32> to vector<32xf32>
    %9 = vector.extract_strided_slice %0 {offsets = [1, 0], sizes = [1, 32], strides = [1, 1]} : vector<24x128xf32> to vector<1x32xf32>
    %10 = vector.shape_cast %9 : vector<1x32xf32> to vector<32xf32>
    %cst = arith.constant dense<0.000000e+00> : vector<16xf32>
    %11 = vector.multi_reduction <add>, %6, %cst [1] : vector<16x32xf32> to vector<16xf32>
    %12 = vector.shape_cast %11 : vector<16xf32> to vector<16x1xf32>
    %cst_5 = arith.constant 3.200000e+01 : f32
    %13 = vector.broadcast %cst_5 : f32 to vector<16x1xf32>
    %14 = arith.divf %12, %13 : vector<16x1xf32>
    %15 = vector.broadcast %14 : vector<16x1xf32> to vector<16x32xf32>
    %16 = arith.subf %6, %15 : vector<16x32xf32>
    %17 = arith.mulf %16, %16 : vector<16x32xf32>
    %cst_6 = arith.constant dense<0.000000e+00> : vector<16xf32>
    %18 = vector.multi_reduction <add>, %17, %cst_6 [1] : vector<16x32xf32> to vector<16xf32>
    %19 = vector.shape_cast %18 : vector<16xf32> to vector<16x1xf32>
    %cst_7 = arith.constant 3.200000e+01 : f32
    %20 = vector.broadcast %cst_7 : f32 to vector<16x1xf32>
    %21 = arith.divf %19, %20 : vector<16x1xf32>
    %22 = vector.broadcast %14 : vector<16x1xf32> to vector<16x32xf32>
    %23 = arith.subf %6, %22 : vector<16x32xf32>
    %cst_8 = arith.constant 9.99999996E-13 : f32
    %24 = vector.broadcast %cst_8 : f32 to vector<16x1xf32>
    %25 = arith.addf %21, %24 : vector<16x1xf32>
    %26 = math.rsqrt %25 : vector<16x1xf32>
    %27 = vector.broadcast %26 : vector<16x1xf32> to vector<16x32xf32>
    %28 = arith.mulf %23, %27 : vector<16x32xf32>
    %29 = vector.shape_cast %8 : vector<32xf32> to vector<1x32xf32>
    %30 = vector.broadcast %29 : vector<1x32xf32> to vector<16x32xf32>
    %31 = arith.mulf %28, %30 : vector<16x32xf32>
    %32 = vector.shape_cast %10 : vector<32xf32> to vector<1x32xf32>
    %33 = vector.broadcast %32 : vector<1x32xf32> to vector<16x32xf32>
    %34 = arith.addf %31, %33 : vector<16x32xf32>
    %35 = arith.truncf %34 : vector<16x32xf32> to vector<16x32xbf16>
    %c0_9 = arith.constant 0 : index
    %c0_10 = arith.constant 0 : index
    %c0_11 = arith.constant 0 : index
    %36 = vector.load %arg3[%c0_9, %c0_10, %c0_11] : memref<2x32x96xbf16, #tpu.memory_space<vmem>>, vector<1x32x96xbf16>
    %37 = vector.shape_cast %36 : vector<1x32x96xbf16> to vector<32x96xbf16>
    %cst_12 = arith.constant dense<0.000000e+00> : vector<16x96xf32>
    %38 = tpu.matmul %35, %37, %cst_12 {dimension_numbers = #tpu.dot_dimension_numbers<[1], [0], [0], [1], [0, 0, 1, 1], [], []>} : vector<16x32xbf16>, vector<32x96xbf16>, vector<16x96xf32> -> vector<16x96xf32>
    %39 = vector.extract_strided_slice %0 {offsets = [4, 0], sizes = [1, 96], strides = [1, 1]} : vector<24x128xf32> to vector<1x96xf32>
    %40 = vector.shape_cast %39 : vector<1x96xf32> to vector<96xf32>
    %41 = vector.shape_cast %40 : vector<96xf32> to vector<1x96xf32>
    %42 = vector.broadcast %41 : vector<1x96xf32> to vector<16x96xf32>
    %43 = arith.addf %38, %42 : vector<16x96xf32>
    %44 = arith.truncf %43 : vector<16x96xf32> to vector<16x96xbf16>
    %45 = vector.extract_strided_slice %44 {offsets = [0, 0], sizes = [16, 8], strides = [1, 1]} : vector<16x96xbf16> to vector<16x8xbf16>
    %46 = vector.shape_cast %45 : vector<16x8xbf16> to vector<2x8x8xbf16>
    %47 = vector.extract_strided_slice %44 {offsets = [0, 8], sizes = [16, 8], strides = [1, 1]} : vector<16x96xbf16> to vector<16x8xbf16>
    %48 = vector.shape_cast %47 : vector<16x8xbf16> to vector<2x8x8xbf16>
    %49 = vector.extract_strided_slice %44 {offsets = [0, 16], sizes = [16, 8], strides = [1, 1]} : vector<16x96xbf16> to vector<16x8xbf16>
    %50 = vector.shape_cast %49 : vector<16x8xbf16> to vector<2x8x8xbf16>
    %51 = vector.extract_strided_slice %44 {offsets = [0, 24], sizes = [16, 8], strides = [1, 1]} : vector<16x96xbf16> to vector<16x8xbf16>
    %52 = vector.shape_cast %51 : vector<16x8xbf16> to vector<2x8x8xbf16>
    %53 = tpu.concatenate %46, %48, %50, %52 in 0 : vector<2x8x8xbf16>, vector<2x8x8xbf16>, vector<2x8x8xbf16>, vector<2x8x8xbf16> -> vector<8x8x8xbf16>
    %54 = vector.extract_strided_slice %44 {offsets = [0, 32], sizes = [16, 8], strides = [1, 1]} : vector<16x96xbf16> to vector<16x8xbf16>
    %55 = vector.shape_cast %54 : vector<16x8xbf16> to vector<2x8x8xbf16>
    %56 = vector.extract_strided_slice %44 {offsets = [0, 40], sizes = [16, 8], strides = [1, 1]} : vector<16x96xbf16> to vector<16x8xbf16>
    %57 = vector.shape_cast %56 : vector<16x8xbf16> to vector<2x8x8xbf16>
    %58 = vector.extract_strided_slice %44 {offsets = [0, 48], sizes = [16, 8], strides = [1, 1]} : vector<16x96xbf16> to vector<16x8xbf16>
    %59 = vector.shape_cast %58 : vector<16x8xbf16> to vector<2x8x8xbf16>
    %60 = vector.extract_strided_slice %44 {offsets = [0, 56], sizes = [16, 8], strides = [1, 1]} : vector<16x96xbf16> to vector<16x8xbf16>
    %61 = vector.shape_cast %60 : vector<16x8xbf16> to vector<2x8x8xbf16>
    %62 = tpu.concatenate %55, %57, %59, %61 in 0 : vector<2x8x8xbf16>, vector<2x8x8xbf16>, vector<2x8x8xbf16>, vector<2x8x8xbf16> -> vector<8x8x8xbf16>
    %63 = vector.extract_strided_slice %44 {offsets = [0, 64], sizes = [16, 8], strides = [1, 1]} : vector<16x96xbf16> to vector<16x8xbf16>
    %64 = vector.shape_cast %63 : vector<16x8xbf16> to vector<2x8x8xbf16>
    %65 = vector.extract_strided_slice %44 {offsets = [0, 72], sizes = [16, 8], strides = [1, 1]} : vector<16x96xbf16> to vector<16x8xbf16>
    %66 = vector.shape_cast %65 : vector<16x8xbf16> to vector<2x8x8xbf16>
    %67 = vector.extract_strided_slice %44 {offsets = [0, 80], sizes = [16, 8], strides = [1, 1]} : vector<16x96xbf16> to vector<16x8xbf16>
    %68 = vector.shape_cast %67 : vector<16x8xbf16> to vector<2x8x8xbf16>
    %69 = vector.extract_strided_slice %44 {offsets = [0, 88], sizes = [16, 8], strides = [1, 1]} : vector<16x96xbf16> to vector<16x8xbf16>
    %70 = vector.shape_cast %69 : vector<16x8xbf16> to vector<2x8x8xbf16>
    %71 = tpu.concatenate %64, %66, %68, %70 in 0 : vector<2x8x8xbf16>, vector<2x8x8xbf16>, vector<2x8x8xbf16>, vector<2x8x8xbf16> -> vector<8x8x8xbf16>
    "tpu.trace_start"() <{level = 10 : i32, message = "bqd,bkd->bqk"}> : () -> ()
    %cst_13 = arith.constant dense<0.000000e+00> : vector<8x8x8xf32>
    %72 = tpu.matmul %53, %62, %cst_13 {dimension_numbers = #tpu.dot_dimension_numbers<[2], [2], [1], [1], [0, 0, 0, 1, 1, 1], [0], [0]>} : vector<8x8x8xbf16>, vector<8x8x8xbf16>, vector<8x8x8xf32> -> vector<8x8x8xf32>
    "tpu.trace_stop"() : () -> ()
    %cst_14 = arith.constant 0.353553385 : f32
    %73 = vector.broadcast %cst_14 : f32 to vector<8x8x8xf32>
    %74 = arith.mulf %72, %73 : vector<8x8x8xf32>
    %75 = arith.addf %74, %5 : vector<8x8x8xf32>
    %cst_15 = arith.constant dense<0xFF800000> : vector<8x8xf32>
    %76 = vector.multi_reduction <maximumf>, %75, %cst_15 [2] : vector<8x8x8xf32> to vector<8x8xf32>
    %77 = vector.shape_cast %76 : vector<8x8xf32> to vector<8x8x1xf32>
    %78 = vector.broadcast %77 : vector<8x8x1xf32> to vector<8x8x8xf32>
    %79 = arith.subf %75, %78 : vector<8x8x8xf32>
    %80 = math.exp %79 : vector<8x8x8xf32>
    %cst_16 = arith.constant dense<0.000000e+00> : vector<8x8xf32>
    %81 = vector.multi_reduction <add>, %80, %cst_16 [2] : vector<8x8x8xf32> to vector<8x8xf32>
    %82 = vector.shape_cast %81 : vector<8x8xf32> to vector<8x8x1xf32>
    %83 = tpu.reciprocal %82 {approx = true} : vector<8x8x1xf32> -> vector<8x8x1xf32>
    %84 = vector.broadcast %83 : vector<8x8x1xf32> to vector<8x8x8xf32>
    %85 = arith.mulf %80, %84 : vector<8x8x8xf32>
    %86 = arith.truncf %85 : vector<8x8x8xf32> to vector<8x8x8xbf16>
    "tpu.trace_start"() <{level = 10 : i32, message = "bqk,bkd->bqd"}> : () -> ()
    %cst_17 = arith.constant dense<0.000000e+00> : vector<8x8x8xf32>
    %87 = tpu.matmul %86, %71, %cst_17 {dimension_numbers = #tpu.dot_dimension_numbers<[2], [1], [1], [2], [0, 0, 0, 1, 1, 2], [0], [0]>} : vector<8x8x8xbf16>, vector<8x8x8xbf16>, vector<8x8x8xf32> -> vector<8x8x8xf32>
    "tpu.trace_stop"() : () -> ()
    %88 = vector.extract_strided_slice %87 {offsets = [0, 0, 0], sizes = [2, 8, 8], strides = [1, 1, 1]} : vector<8x8x8xf32> to vector<2x8x8xf32>
    %89 = vector.extract_strided_slice %87 {offsets = [2, 0, 0], sizes = [2, 8, 8], strides = [1, 1, 1]} : vector<8x8x8xf32> to vector<2x8x8xf32>
    %90 = vector.extract_strided_slice %87 {offsets = [4, 0, 0], sizes = [2, 8, 8], strides = [1, 1, 1]} : vector<8x8x8xf32> to vector<2x8x8xf32>
    %91 = vector.extract_strided_slice %87 {offsets = [6, 0, 0], sizes = [2, 8, 8], strides = [1, 1, 1]} : vector<8x8x8xf32> to vector<2x8x8xf32>
    %92 = tpu.concatenate %88, %89, %90, %91 in 2 : vector<2x8x8xf32>, vector<2x8x8xf32>, vector<2x8x8xf32>, vector<2x8x8xf32> -> vector<2x8x32xf32>
    %93 = vector.shape_cast %92 : vector<2x8x32xf32> to vector<16x32xf32>
    %94 = arith.truncf %93 : vector<16x32xf32> to vector<16x32xbf16>
    %c0_18 = arith.constant 0 : index
    %c0_19 = arith.constant 0 : index
    %c0_20 = arith.constant 0 : index
    %95 = vector.load %arg4[%c0_18, %c0_19, %c0_20] : memref<2x32x32xbf16, #tpu.memory_space<vmem>>, vector<1x32x32xbf16>
    %96 = vector.shape_cast %95 : vector<1x32x32xbf16> to vector<32x32xbf16>
    %cst_21 = arith.constant dense<0.000000e+00> : vector<16x32xf32>
    %97 = tpu.matmul %94, %96, %cst_21 {dimension_numbers = #tpu.dot_dimension_numbers<[1], [0], [0], [1], [0, 0, 1, 1], [], []>} : vector<16x32xbf16>, vector<32x32xbf16>, vector<16x32xf32> -> vector<16x32xf32>
    %98 = vector.extract_strided_slice %0 {offsets = [5, 0], sizes = [1, 32], strides = [1, 1]} : vector<24x128xf32> to vector<1x32xf32>
    %99 = vector.shape_cast %98 : vector<1x32xf32> to vector<32xf32>
    %100 = vector.shape_cast %99 : vector<32xf32> to vector<1x32xf32>
    %101 = vector.broadcast %100 : vector<1x32xf32> to vector<16x32xf32>
    %102 = arith.addf %97, %101 : vector<16x32xf32>
    %103 = arith.addf %34, %102 : vector<16x32xf32>
    %104 = vector.extract_strided_slice %0 {offsets = [6, 0], sizes = [1, 32], strides = [1, 1]} : vector<24x128xf32> to vector<1x32xf32>
    %105 = vector.shape_cast %104 : vector<1x32xf32> to vector<32xf32>
    %106 = vector.extract_strided_slice %0 {offsets = [7, 0], sizes = [1, 32], strides = [1, 1]} : vector<24x128xf32> to vector<1x32xf32>
    %107 = vector.shape_cast %106 : vector<1x32xf32> to vector<32xf32>
    %cst_22 = arith.constant dense<0.000000e+00> : vector<16xf32>
    %108 = vector.multi_reduction <add>, %103, %cst_22 [1] : vector<16x32xf32> to vector<16xf32>
    %109 = vector.shape_cast %108 : vector<16xf32> to vector<16x1xf32>
    %cst_23 = arith.constant 3.200000e+01 : f32
    %110 = vector.broadcast %cst_23 : f32 to vector<16x1xf32>
    %111 = arith.divf %109, %110 : vector<16x1xf32>
    %112 = vector.broadcast %111 : vector<16x1xf32> to vector<16x32xf32>
    %113 = arith.subf %103, %112 : vector<16x32xf32>
    %114 = arith.mulf %113, %113 : vector<16x32xf32>
    %cst_24 = arith.constant dense<0.000000e+00> : vector<16xf32>
    %115 = vector.multi_reduction <add>, %114, %cst_24 [1] : vector<16x32xf32> to vector<16xf32>
    %116 = vector.shape_cast %115 : vector<16xf32> to vector<16x1xf32>
    %cst_25 = arith.constant 3.200000e+01 : f32
    %117 = vector.broadcast %cst_25 : f32 to vector<16x1xf32>
    %118 = arith.divf %116, %117 : vector<16x1xf32>
    %119 = vector.broadcast %111 : vector<16x1xf32> to vector<16x32xf32>
    %120 = arith.subf %103, %119 : vector<16x32xf32>
    %cst_26 = arith.constant 9.99999996E-13 : f32
    %121 = vector.broadcast %cst_26 : f32 to vector<16x1xf32>
    %122 = arith.addf %118, %121 : vector<16x1xf32>
    %123 = math.rsqrt %122 : vector<16x1xf32>
    %124 = vector.broadcast %123 : vector<16x1xf32> to vector<16x32xf32>
    %125 = arith.mulf %120, %124 : vector<16x32xf32>
    %126 = vector.shape_cast %105 : vector<32xf32> to vector<1x32xf32>
    %127 = vector.broadcast %126 : vector<1x32xf32> to vector<16x32xf32>
    %128 = arith.mulf %125, %127 : vector<16x32xf32>
    %129 = vector.shape_cast %107 : vector<32xf32> to vector<1x32xf32>
    %130 = vector.broadcast %129 : vector<1x32xf32> to vector<16x32xf32>
    %131 = arith.addf %128, %130 : vector<16x32xf32>
    %132 = arith.truncf %131 : vector<16x32xf32> to vector<16x32xbf16>
    %c0_27 = arith.constant 0 : index
    %c0_28 = arith.constant 0 : index
    %c0_29 = arith.constant 0 : index
    %133 = vector.load %arg5[%c0_27, %c0_28, %c0_29] : memref<2x32x128xbf16, #tpu.memory_space<vmem>>, vector<1x32x128xbf16>
    %134 = vector.shape_cast %133 : vector<1x32x128xbf16> to vector<32x128xbf16>
    %cst_30 = arith.constant dense<0.000000e+00> : vector<16x128xf32>
    %135 = tpu.matmul %132, %134, %cst_30 {dimension_numbers = #tpu.dot_dimension_numbers<[1], [0], [0], [1], [0, 0, 1, 1], [], []>} : vector<16x32xbf16>, vector<32x128xbf16>, vector<16x128xf32> -> vector<16x128xf32>
    %136 = vector.extract_strided_slice %0 {offsets = [8, 0], sizes = [1, 128], strides = [1, 1]} : vector<24x128xf32> to vector<1x128xf32>
    %137 = vector.shape_cast %136 : vector<1x128xf32> to vector<128xf32>
    %138 = vector.shape_cast %137 : vector<128xf32> to vector<1x128xf32>
    %139 = vector.broadcast %138 : vector<1x128xf32> to vector<16x128xf32>
    %140 = arith.addf %135, %139 : vector<16x128xf32>
    %cst_31 = arith.constant 5.000000e-01 : f32
    %141 = vector.broadcast %cst_31 : f32 to vector<16x128xf32>
    %142 = arith.mulf %141, %140 : vector<16x128xf32>
    %cst_32 = arith.constant 4.471500e-02 : f32
    %143 = vector.broadcast %cst_32 : f32 to vector<16x128xf32>
    %144 = arith.mulf %143, %140 : vector<16x128xf32>
    %145 = arith.mulf %144, %140 : vector<16x128xf32>
    %146 = arith.mulf %145, %140 : vector<16x128xf32>
    %147 = arith.addf %140, %146 : vector<16x128xf32>
    %cst_33 = arith.constant 0.797884583 : f32
    %148 = vector.broadcast %cst_33 : f32 to vector<16x128xf32>
    %149 = arith.mulf %148, %147 : vector<16x128xf32>
    %150 = math.tanh %149 : vector<16x128xf32>
    %cst_34 = arith.constant 1.000000e+00 : f32
    %151 = vector.broadcast %cst_34 : f32 to vector<16x128xf32>
    %152 = arith.addf %151, %150 : vector<16x128xf32>
    %153 = arith.mulf %142, %152 : vector<16x128xf32>
    %154 = arith.truncf %153 : vector<16x128xf32> to vector<16x128xbf16>
    %c0_35 = arith.constant 0 : index
    %c0_36 = arith.constant 0 : index
    %c0_37 = arith.constant 0 : index
    %155 = vector.load %arg6[%c0_35, %c0_36, %c0_37] : memref<2x128x32xbf16, #tpu.memory_space<vmem>>, vector<1x128x32xbf16>
    %156 = vector.shape_cast %155 : vector<1x128x32xbf16> to vector<128x32xbf16>
    %cst_38 = arith.constant dense<0.000000e+00> : vector<16x32xf32>
    %157 = tpu.matmul %154, %156, %cst_38 {dimension_numbers = #tpu.dot_dimension_numbers<[1], [0], [0], [1], [0, 0, 1, 1], [], []>} : vector<16x128xbf16>, vector<128x32xbf16>, vector<16x32xf32> -> vector<16x32xf32>
    %158 = vector.extract_strided_slice %0 {offsets = [9, 0], sizes = [1, 32], strides = [1, 1]} : vector<24x128xf32> to vector<1x32xf32>
    %159 = vector.shape_cast %158 : vector<1x32xf32> to vector<32xf32>
    %160 = vector.shape_cast %159 : vector<32xf32> to vector<1x32xf32>
    %161 = vector.broadcast %160 : vector<1x32xf32> to vector<16x32xf32>
    %162 = arith.addf %157, %161 : vector<16x32xf32>
    %163 = arith.addf %131, %162 : vector<16x32xf32>
    %164 = vector.extract_strided_slice %0 {offsets = [10, 0], sizes = [1, 32], strides = [1, 1]} : vector<24x128xf32> to vector<1x32xf32>
    %165 = vector.shape_cast %164 : vector<1x32xf32> to vector<32xf32>
    %166 = vector.extract_strided_slice %0 {offsets = [11, 0], sizes = [1, 32], strides = [1, 1]} : vector<24x128xf32> to vector<1x32xf32>
    %167 = vector.shape_cast %166 : vector<1x32xf32> to vector<32xf32>
    %cst_39 = arith.constant dense<0.000000e+00> : vector<16xf32>
    %168 = vector.multi_reduction <add>, %163, %cst_39 [1] : vector<16x32xf32> to vector<16xf32>
    %169 = vector.shape_cast %168 : vector<16xf32> to vector<16x1xf32>
    %cst_40 = arith.constant 3.200000e+01 : f32
    %170 = vector.broadcast %cst_40 : f32 to vector<16x1xf32>
    %171 = arith.divf %169, %170 : vector<16x1xf32>
    %172 = vector.broadcast %171 : vector<16x1xf32> to vector<16x32xf32>
    %173 = arith.subf %163, %172 : vector<16x32xf32>
    %174 = arith.mulf %173, %173 : vector<16x32xf32>
    %cst_41 = arith.constant dense<0.000000e+00> : vector<16xf32>
    %175 = vector.multi_reduction <add>, %174, %cst_41 [1] : vector<16x32xf32> to vector<16xf32>
    %176 = vector.shape_cast %175 : vector<16xf32> to vector<16x1xf32>
    %cst_42 = arith.constant 3.200000e+01 : f32
    %177 = vector.broadcast %cst_42 : f32 to vector<16x1xf32>
    %178 = arith.divf %176, %177 : vector<16x1xf32>
    %179 = vector.broadcast %171 : vector<16x1xf32> to vector<16x32xf32>
    %180 = arith.subf %163, %179 : vector<16x32xf32>
    %cst_43 = arith.constant 9.99999996E-13 : f32
    %181 = vector.broadcast %cst_43 : f32 to vector<16x1xf32>
    %182 = arith.addf %178, %181 : vector<16x1xf32>
    %183 = math.rsqrt %182 : vector<16x1xf32>
    %184 = vector.broadcast %183 : vector<16x1xf32> to vector<16x32xf32>
    %185 = arith.mulf %180, %184 : vector<16x32xf32>
    %186 = vector.shape_cast %165 : vector<32xf32> to vector<1x32xf32>
    %187 = vector.broadcast %186 : vector<1x32xf32> to vector<16x32xf32>
    %188 = arith.mulf %185, %187 : vector<16x32xf32>
    %189 = vector.shape_cast %167 : vector<32xf32> to vector<1x32xf32>
    %190 = vector.broadcast %189 : vector<1x32xf32> to vector<16x32xf32>
    %191 = arith.addf %188, %190 : vector<16x32xf32>
    %192 = arith.truncf %191 : vector<16x32xf32> to vector<16x32xbf16>
    %c1 = arith.constant 1 : index
    %c0_44 = arith.constant 0 : index
    %c0_45 = arith.constant 0 : index
    %193 = vector.load %arg3[%c1, %c0_44, %c0_45] : memref<2x32x96xbf16, #tpu.memory_space<vmem>>, vector<1x32x96xbf16>
    %194 = vector.shape_cast %193 : vector<1x32x96xbf16> to vector<32x96xbf16>
    %cst_46 = arith.constant dense<0.000000e+00> : vector<16x96xf32>
    %195 = tpu.matmul %192, %194, %cst_46 {dimension_numbers = #tpu.dot_dimension_numbers<[1], [0], [0], [1], [0, 0, 1, 1], [], []>} : vector<16x32xbf16>, vector<32x96xbf16>, vector<16x96xf32> -> vector<16x96xf32>
    %196 = vector.extract_strided_slice %0 {offsets = [12, 0], sizes = [1, 96], strides = [1, 1]} : vector<24x128xf32> to vector<1x96xf32>
    %197 = vector.shape_cast %196 : vector<1x96xf32> to vector<96xf32>
    %198 = vector.shape_cast %197 : vector<96xf32> to vector<1x96xf32>
    %199 = vector.broadcast %198 : vector<1x96xf32> to vector<16x96xf32>
    %200 = arith.addf %195, %199 : vector<16x96xf32>
    %201 = arith.truncf %200 : vector<16x96xf32> to vector<16x96xbf16>
    %202 = vector.extract_strided_slice %201 {offsets = [0, 0], sizes = [16, 8], strides = [1, 1]} : vector<16x96xbf16> to vector<16x8xbf16>
    %203 = vector.shape_cast %202 : vector<16x8xbf16> to vector<2x8x8xbf16>
    %204 = vector.extract_strided_slice %201 {offsets = [0, 8], sizes = [16, 8], strides = [1, 1]} : vector<16x96xbf16> to vector<16x8xbf16>
    %205 = vector.shape_cast %204 : vector<16x8xbf16> to vector<2x8x8xbf16>
    %206 = vector.extract_strided_slice %201 {offsets = [0, 16], sizes = [16, 8], strides = [1, 1]} : vector<16x96xbf16> to vector<16x8xbf16>
    %207 = vector.shape_cast %206 : vector<16x8xbf16> to vector<2x8x8xbf16>
    %208 = vector.extract_strided_slice %201 {offsets = [0, 24], sizes = [16, 8], strides = [1, 1]} : vector<16x96xbf16> to vector<16x8xbf16>
    %209 = vector.shape_cast %208 : vector<16x8xbf16> to vector<2x8x8xbf16>
    %210 = tpu.concatenate %203, %205, %207, %209 in 0 : vector<2x8x8xbf16>, vector<2x8x8xbf16>, vector<2x8x8xbf16>, vector<2x8x8xbf16> -> vector<8x8x8xbf16>
    %211 = vector.extract_strided_slice %201 {offsets = [0, 32], sizes = [16, 8], strides = [1, 1]} : vector<16x96xbf16> to vector<16x8xbf16>
    %212 = vector.shape_cast %211 : vector<16x8xbf16> to vector<2x8x8xbf16>
    %213 = vector.extract_strided_slice %201 {offsets = [0, 40], sizes = [16, 8], strides = [1, 1]} : vector<16x96xbf16> to vector<16x8xbf16>
    %214 = vector.shape_cast %213 : vector<16x8xbf16> to vector<2x8x8xbf16>
    %215 = vector.extract_strided_slice %201 {offsets = [0, 48], sizes = [16, 8], strides = [1, 1]} : vector<16x96xbf16> to vector<16x8xbf16>
    %216 = vector.shape_cast %215 : vector<16x8xbf16> to vector<2x8x8xbf16>
    %217 = vector.extract_strided_slice %201 {offsets = [0, 56], sizes = [16, 8], strides = [1, 1]} : vector<16x96xbf16> to vector<16x8xbf16>
    %218 = vector.shape_cast %217 : vector<16x8xbf16> to vector<2x8x8xbf16>
    %219 = tpu.concatenate %212, %214, %216, %218 in 0 : vector<2x8x8xbf16>, vector<2x8x8xbf16>, vector<2x8x8xbf16>, vector<2x8x8xbf16> -> vector<8x8x8xbf16>
    %220 = vector.extract_strided_slice %201 {offsets = [0, 64], sizes = [16, 8], strides = [1, 1]} : vector<16x96xbf16> to vector<16x8xbf16>
    %221 = vector.shape_cast %220 : vector<16x8xbf16> to vector<2x8x8xbf16>
    %222 = vector.extract_strided_slice %201 {offsets = [0, 72], sizes = [16, 8], strides = [1, 1]} : vector<16x96xbf16> to vector<16x8xbf16>
    %223 = vector.shape_cast %222 : vector<16x8xbf16> to vector<2x8x8xbf16>
    %224 = vector.extract_strided_slice %201 {offsets = [0, 80], sizes = [16, 8], strides = [1, 1]} : vector<16x96xbf16> to vector<16x8xbf16>
    %225 = vector.shape_cast %224 : vector<16x8xbf16> to vector<2x8x8xbf16>
    %226 = vector.extract_strided_slice %201 {offsets = [0, 88], sizes = [16, 8], strides = [1, 1]} : vector<16x96xbf16> to vector<16x8xbf16>
    %227 = vector.shape_cast %226 : vector<16x8xbf16> to vector<2x8x8xbf16>
    %228 = tpu.concatenate %221, %223, %225, %227 in 0 : vector<2x8x8xbf16>, vector<2x8x8xbf16>, vector<2x8x8xbf16>, vector<2x8x8xbf16> -> vector<8x8x8xbf16>
    "tpu.trace_start"() <{level = 10 : i32, message = "bqd,bkd->bqk"}> : () -> ()
    %cst_47 = arith.constant dense<0.000000e+00> : vector<8x8x8xf32>
    %229 = tpu.matmul %210, %219, %cst_47 {dimension_numbers = #tpu.dot_dimension_numbers<[2], [2], [1], [1], [0, 0, 0, 1, 1, 1], [0], [0]>} : vector<8x8x8xbf16>, vector<8x8x8xbf16>, vector<8x8x8xf32> -> vector<8x8x8xf32>
    "tpu.trace_stop"() : () -> ()
    %cst_48 = arith.constant 0.353553385 : f32
    %230 = vector.broadcast %cst_48 : f32 to vector<8x8x8xf32>
    %231 = arith.mulf %229, %230 : vector<8x8x8xf32>
    %232 = arith.addf %231, %5 : vector<8x8x8xf32>
    %cst_49 = arith.constant dense<0xFF800000> : vector<8x8xf32>
    %233 = vector.multi_reduction <maximumf>, %232, %cst_49 [2] : vector<8x8x8xf32> to vector<8x8xf32>
    %234 = vector.shape_cast %233 : vector<8x8xf32> to vector<8x8x1xf32>
    %235 = vector.broadcast %234 : vector<8x8x1xf32> to vector<8x8x8xf32>
    %236 = arith.subf %232, %235 : vector<8x8x8xf32>
    %237 = math.exp %236 : vector<8x8x8xf32>
    %cst_50 = arith.constant dense<0.000000e+00> : vector<8x8xf32>
    %238 = vector.multi_reduction <add>, %237, %cst_50 [2] : vector<8x8x8xf32> to vector<8x8xf32>
    %239 = vector.shape_cast %238 : vector<8x8xf32> to vector<8x8x1xf32>
    %240 = tpu.reciprocal %239 {approx = true} : vector<8x8x1xf32> -> vector<8x8x1xf32>
    %241 = vector.broadcast %240 : vector<8x8x1xf32> to vector<8x8x8xf32>
    %242 = arith.mulf %237, %241 : vector<8x8x8xf32>
    %243 = arith.truncf %242 : vector<8x8x8xf32> to vector<8x8x8xbf16>
    "tpu.trace_start"() <{level = 10 : i32, message = "bqk,bkd->bqd"}> : () -> ()
    %cst_51 = arith.constant dense<0.000000e+00> : vector<8x8x8xf32>
    %244 = tpu.matmul %243, %228, %cst_51 {dimension_numbers = #tpu.dot_dimension_numbers<[2], [1], [1], [2], [0, 0, 0, 1, 1, 2], [0], [0]>} : vector<8x8x8xbf16>, vector<8x8x8xbf16>, vector<8x8x8xf32> -> vector<8x8x8xf32>
    "tpu.trace_stop"() : () -> ()
    %245 = vector.extract_strided_slice %244 {offsets = [0, 0, 0], sizes = [2, 8, 8], strides = [1, 1, 1]} : vector<8x8x8xf32> to vector<2x8x8xf32>
    %246 = vector.extract_strided_slice %244 {offsets = [2, 0, 0], sizes = [2, 8, 8], strides = [1, 1, 1]} : vector<8x8x8xf32> to vector<2x8x8xf32>
    %247 = vector.extract_strided_slice %244 {offsets = [4, 0, 0], sizes = [2, 8, 8], strides = [1, 1, 1]} : vector<8x8x8xf32> to vector<2x8x8xf32>
    %248 = vector.extract_strided_slice %244 {offsets = [6, 0, 0], sizes = [2, 8, 8], strides = [1, 1, 1]} : vector<8x8x8xf32> to vector<2x8x8xf32>
    %249 = tpu.concatenate %245, %246, %247, %248 in 2 : vector<2x8x8xf32>, vector<2x8x8xf32>, vector<2x8x8xf32>, vector<2x8x8xf32> -> vector<2x8x32xf32>
    %250 = vector.shape_cast %249 : vector<2x8x32xf32> to vector<16x32xf32>
    %251 = arith.truncf %250 : vector<16x32xf32> to vector<16x32xbf16>
    %c1_52 = arith.constant 1 : index
    %c0_53 = arith.constant 0 : index
    %c0_54 = arith.constant 0 : index
    %252 = vector.load %arg4[%c1_52, %c0_53, %c0_54] : memref<2x32x32xbf16, #tpu.memory_space<vmem>>, vector<1x32x32xbf16>
    %253 = vector.shape_cast %252 : vector<1x32x32xbf16> to vector<32x32xbf16>
    %cst_55 = arith.constant dense<0.000000e+00> : vector<16x32xf32>
    %254 = tpu.matmul %251, %253, %cst_55 {dimension_numbers = #tpu.dot_dimension_numbers<[1], [0], [0], [1], [0, 0, 1, 1], [], []>} : vector<16x32xbf16>, vector<32x32xbf16>, vector<16x32xf32> -> vector<16x32xf32>
    %255 = vector.extract_strided_slice %0 {offsets = [13, 0], sizes = [1, 32], strides = [1, 1]} : vector<24x128xf32> to vector<1x32xf32>
    %256 = vector.shape_cast %255 : vector<1x32xf32> to vector<32xf32>
    %257 = vector.shape_cast %256 : vector<32xf32> to vector<1x32xf32>
    %258 = vector.broadcast %257 : vector<1x32xf32> to vector<16x32xf32>
    %259 = arith.addf %254, %258 : vector<16x32xf32>
    %260 = arith.addf %191, %259 : vector<16x32xf32>
    %261 = vector.extract_strided_slice %0 {offsets = [14, 0], sizes = [1, 32], strides = [1, 1]} : vector<24x128xf32> to vector<1x32xf32>
    %262 = vector.shape_cast %261 : vector<1x32xf32> to vector<32xf32>
    %263 = vector.extract_strided_slice %0 {offsets = [15, 0], sizes = [1, 32], strides = [1, 1]} : vector<24x128xf32> to vector<1x32xf32>
    %264 = vector.shape_cast %263 : vector<1x32xf32> to vector<32xf32>
    %cst_56 = arith.constant dense<0.000000e+00> : vector<16xf32>
    %265 = vector.multi_reduction <add>, %260, %cst_56 [1] : vector<16x32xf32> to vector<16xf32>
    %266 = vector.shape_cast %265 : vector<16xf32> to vector<16x1xf32>
    %cst_57 = arith.constant 3.200000e+01 : f32
    %267 = vector.broadcast %cst_57 : f32 to vector<16x1xf32>
    %268 = arith.divf %266, %267 : vector<16x1xf32>
    %269 = vector.broadcast %268 : vector<16x1xf32> to vector<16x32xf32>
    %270 = arith.subf %260, %269 : vector<16x32xf32>
    %271 = arith.mulf %270, %270 : vector<16x32xf32>
    %cst_58 = arith.constant dense<0.000000e+00> : vector<16xf32>
    %272 = vector.multi_reduction <add>, %271, %cst_58 [1] : vector<16x32xf32> to vector<16xf32>
    %273 = vector.shape_cast %272 : vector<16xf32> to vector<16x1xf32>
    %cst_59 = arith.constant 3.200000e+01 : f32
    %274 = vector.broadcast %cst_59 : f32 to vector<16x1xf32>
    %275 = arith.divf %273, %274 : vector<16x1xf32>
    %276 = vector.broadcast %268 : vector<16x1xf32> to vector<16x32xf32>
    %277 = arith.subf %260, %276 : vector<16x32xf32>
    %cst_60 = arith.constant 9.99999996E-13 : f32
    %278 = vector.broadcast %cst_60 : f32 to vector<16x1xf32>
    %279 = arith.addf %275, %278 : vector<16x1xf32>
    %280 = math.rsqrt %279 : vector<16x1xf32>
    %281 = vector.broadcast %280 : vector<16x1xf32> to vector<16x32xf32>
    %282 = arith.mulf %277, %281 : vector<16x32xf32>
    %283 = vector.shape_cast %262 : vector<32xf32> to vector<1x32xf32>
    %284 = vector.broadcast %283 : vector<1x32xf32> to vector<16x32xf32>
    %285 = arith.mulf %282, %284 : vector<16x32xf32>
    %286 = vector.shape_cast %264 : vector<32xf32> to vector<1x32xf32>
    %287 = vector.broadcast %286 : vector<1x32xf32> to vector<16x32xf32>
    %288 = arith.addf %285, %287 : vector<16x32xf32>
    %289 = arith.truncf %288 : vector<16x32xf32> to vector<16x32xbf16>
    %c1_61 = arith.constant 1 : index
    %c0_62 = arith.constant 0 : index
    %c0_63 = arith.constant 0 : index
    %290 = vector.load %arg5[%c1_61, %c0_62, %c0_63] : memref<2x32x128xbf16, #tpu.memory_space<vmem>>, vector<1x32x128xbf16>
    %291 = vector.shape_cast %290 : vector<1x32x128xbf16> to vector<32x128xbf16>
    %cst_64 = arith.constant dense<0.000000e+00> : vector<16x128xf32>
    %292 = tpu.matmul %289, %291, %cst_64 {dimension_numbers = #tpu.dot_dimension_numbers<[1], [0], [0], [1], [0, 0, 1, 1], [], []>} : vector<16x32xbf16>, vector<32x128xbf16>, vector<16x128xf32> -> vector<16x128xf32>
    %293 = vector.extract_strided_slice %0 {offsets = [16, 0], sizes = [1, 128], strides = [1, 1]} : vector<24x128xf32> to vector<1x128xf32>
    %294 = vector.shape_cast %293 : vector<1x128xf32> to vector<128xf32>
    %295 = vector.shape_cast %294 : vector<128xf32> to vector<1x128xf32>
    %296 = vector.broadcast %295 : vector<1x128xf32> to vector<16x128xf32>
    %297 = arith.addf %292, %296 : vector<16x128xf32>
    %cst_65 = arith.constant 5.000000e-01 : f32
    %298 = vector.broadcast %cst_65 : f32 to vector<16x128xf32>
    %299 = arith.mulf %298, %297 : vector<16x128xf32>
    %cst_66 = arith.constant 4.471500e-02 : f32
    %300 = vector.broadcast %cst_66 : f32 to vector<16x128xf32>
    %301 = arith.mulf %300, %297 : vector<16x128xf32>
    %302 = arith.mulf %301, %297 : vector<16x128xf32>
    %303 = arith.mulf %302, %297 : vector<16x128xf32>
    %304 = arith.addf %297, %303 : vector<16x128xf32>
    %cst_67 = arith.constant 0.797884583 : f32
    %305 = vector.broadcast %cst_67 : f32 to vector<16x128xf32>
    %306 = arith.mulf %305, %304 : vector<16x128xf32>
    %307 = math.tanh %306 : vector<16x128xf32>
    %cst_68 = arith.constant 1.000000e+00 : f32
    %308 = vector.broadcast %cst_68 : f32 to vector<16x128xf32>
    %309 = arith.addf %308, %307 : vector<16x128xf32>
    %310 = arith.mulf %299, %309 : vector<16x128xf32>
    %311 = arith.truncf %310 : vector<16x128xf32> to vector<16x128xbf16>
    %c1_69 = arith.constant 1 : index
    %c0_70 = arith.constant 0 : index
    %c0_71 = arith.constant 0 : index
    %312 = vector.load %arg6[%c1_69, %c0_70, %c0_71] : memref<2x128x32xbf16, #tpu.memory_space<vmem>>, vector<1x128x32xbf16>
    %313 = vector.shape_cast %312 : vector<1x128x32xbf16> to vector<128x32xbf16>
    %cst_72 = arith.constant dense<0.000000e+00> : vector<16x32xf32>
    %314 = tpu.matmul %311, %313, %cst_72 {dimension_numbers = #tpu.dot_dimension_numbers<[1], [0], [0], [1], [0, 0, 1, 1], [], []>} : vector<16x128xbf16>, vector<128x32xbf16>, vector<16x32xf32> -> vector<16x32xf32>
    %315 = vector.extract_strided_slice %0 {offsets = [17, 0], sizes = [1, 32], strides = [1, 1]} : vector<24x128xf32> to vector<1x32xf32>
    %316 = vector.shape_cast %315 : vector<1x32xf32> to vector<32xf32>
    %317 = vector.shape_cast %316 : vector<32xf32> to vector<1x32xf32>
    %318 = vector.broadcast %317 : vector<1x32xf32> to vector<16x32xf32>
    %319 = arith.addf %314, %318 : vector<16x32xf32>
    %320 = arith.addf %288, %319 : vector<16x32xf32>
    %321 = vector.extract_strided_slice %0 {offsets = [18, 0], sizes = [1, 32], strides = [1, 1]} : vector<24x128xf32> to vector<1x32xf32>
    %322 = vector.shape_cast %321 : vector<1x32xf32> to vector<32xf32>
    %323 = vector.extract_strided_slice %0 {offsets = [19, 0], sizes = [1, 32], strides = [1, 1]} : vector<24x128xf32> to vector<1x32xf32>
    %324 = vector.shape_cast %323 : vector<1x32xf32> to vector<32xf32>
    %cst_73 = arith.constant dense<0.000000e+00> : vector<16xf32>
    %325 = vector.multi_reduction <add>, %320, %cst_73 [1] : vector<16x32xf32> to vector<16xf32>
    %326 = vector.shape_cast %325 : vector<16xf32> to vector<16x1xf32>
    %cst_74 = arith.constant 3.200000e+01 : f32
    %327 = vector.broadcast %cst_74 : f32 to vector<16x1xf32>
    %328 = arith.divf %326, %327 : vector<16x1xf32>
    %329 = vector.broadcast %328 : vector<16x1xf32> to vector<16x32xf32>
    %330 = arith.subf %320, %329 : vector<16x32xf32>
    %331 = arith.mulf %330, %330 : vector<16x32xf32>
    %cst_75 = arith.constant dense<0.000000e+00> : vector<16xf32>
    %332 = vector.multi_reduction <add>, %331, %cst_75 [1] : vector<16x32xf32> to vector<16xf32>
    %333 = vector.shape_cast %332 : vector<16xf32> to vector<16x1xf32>
    %cst_76 = arith.constant 3.200000e+01 : f32
    %334 = vector.broadcast %cst_76 : f32 to vector<16x1xf32>
    %335 = arith.divf %333, %334 : vector<16x1xf32>
    %336 = vector.broadcast %328 : vector<16x1xf32> to vector<16x32xf32>
    %337 = arith.subf %320, %336 : vector<16x32xf32>
    %cst_77 = arith.constant 9.99999996E-13 : f32
    %338 = vector.broadcast %cst_77 : f32 to vector<16x1xf32>
    %339 = arith.addf %335, %338 : vector<16x1xf32>
    %340 = math.rsqrt %339 : vector<16x1xf32>
    %341 = vector.broadcast %340 : vector<16x1xf32> to vector<16x32xf32>
    %342 = arith.mulf %337, %341 : vector<16x32xf32>
    %343 = vector.shape_cast %322 : vector<32xf32> to vector<1x32xf32>
    %344 = vector.broadcast %343 : vector<1x32xf32> to vector<16x32xf32>
    %345 = arith.mulf %342, %344 : vector<16x32xf32>
    %346 = vector.shape_cast %324 : vector<32xf32> to vector<1x32xf32>
    %347 = vector.broadcast %346 : vector<1x32xf32> to vector<16x32xf32>
    %348 = arith.addf %345, %347 : vector<16x32xf32>
    %349 = vector.shape_cast %348 : vector<16x32xf32> to vector<2x8x32xf32>
    %350 = vector.extract_strided_slice %349 {offsets = [0, 0, 0], sizes = [2, 1, 32], strides = [1, 1, 1]} : vector<2x8x32xf32> to vector<2x1x32xf32>
    %351 = vector.shape_cast %350 : vector<2x1x32xf32> to vector<2x32xf32>
    %352 = arith.truncf %351 : vector<2x32xf32> to vector<2x32xbf16>
    %c0_78 = arith.constant 0 : index
    %c0_79 = arith.constant 0 : index
    %353 = vector.load %arg7[%c0_78, %c0_79] : memref<32x32xbf16, #tpu.memory_space<vmem>>, vector<32x32xbf16>
    %cst_80 = arith.constant dense<0.000000e+00> : vector<2x32xf32>
    %354 = tpu.matmul %352, %353, %cst_80 {dimension_numbers = #tpu.dot_dimension_numbers<[1], [0], [0], [1], [0, 0, 1, 1], [], []>} : vector<2x32xbf16>, vector<32x32xbf16>, vector<2x32xf32> -> vector<2x32xf32>
    %355 = vector.extract_strided_slice %0 {offsets = [2, 0], sizes = [1, 32], strides = [1, 1]} : vector<24x128xf32> to vector<1x32xf32>
    %356 = vector.shape_cast %355 : vector<1x32xf32> to vector<32xf32>
    %357 = vector.shape_cast %356 : vector<32xf32> to vector<1x32xf32>
    %358 = vector.broadcast %357 : vector<1x32xf32> to vector<2x32xf32>
    %359 = arith.addf %354, %358 : vector<2x32xf32>
    %360 = math.tanh %359 : vector<2x32xf32>
    %361 = arith.truncf %360 : vector<2x32xf32> to vector<2x32xbf16>
    %c0_81 = arith.constant 0 : index
    %c0_82 = arith.constant 0 : index
    %362 = vector.load %arg8[%c0_81, %c0_82] : memref<32x128xbf16, #tpu.memory_space<vmem>>, vector<32x128xbf16>
    %cst_83 = arith.constant dense<0.000000e+00> : vector<2x128xf32>
    %363 = tpu.matmul %361, %362, %cst_83 {dimension_numbers = #tpu.dot_dimension_numbers<[1], [0], [0], [1], [0, 0, 1, 1], [], []>} : vector<2x32xbf16>, vector<32x128xbf16>, vector<2x128xf32> -> vector<2x128xf32>
    %364 = vector.extract_strided_slice %0 {offsets = [3, 0], sizes = [1, 128], strides = [1, 1]} : vector<24x128xf32> to vector<1x128xf32>
    %365 = vector.shape_cast %364 : vector<1x128xf32> to vector<128xf32>
    %366 = vector.shape_cast %365 : vector<128xf32> to vector<1x128xf32>
    %367 = vector.broadcast %366 : vector<1x128xf32> to vector<2x128xf32>
    %368 = arith.addf %363, %367 : vector<2x128xf32>
    %c0_84 = arith.constant 0 : index
    %c0_85 = arith.constant 0 : index
    %369 = vector.load %arg9[%c0_84, %c0_85] : memref<2x128xf32, #tpu.memory_space<vmem>>, vector<2x128xf32>
    tpu.vector_store %arg9[%c0_84, %c0_85], %368 {strides = array<i32>} : memref<2x128xf32, #tpu.memory_space<vmem>>, vector<2x128xf32>,
    return
  }
}

</mosaic_0001>

<llo_original>
// kernel: tpu_custom_call.1
$region0: #{tpu_custom_call.1}
  #allocation0 [shape = 'u32[]', space=smem, size = 0x4, offset = 0x4, fixed_abs, tag = 'smem constant byte address 0x4 - core index']
  #allocation1 [shape = 'u32[72,128]{1,0:T(1,128)}', space=vmem, size = 0x9000, scoped, tag = 'internal scratch']
  %s0 = inlined_call_operand.vmem [shape: f32[16,32], index: 0, kind: input, shape index: {}]
  %s1 = inlined_call_operand.vmem [shape: f32[2,8], index: 1, kind: input, shape index: {}]
  %s2 = inlined_call_operand.vmem [shape: f32[24,128], index: 2, kind: input, shape index: {}]
  %s3 = inlined_call_operand.vmem [shape: bf16[2,32,96], index: 3, kind: input, shape index: {}]
  %s4 = inlined_call_operand.vmem [shape: bf16[2,32,32], index: 4, kind: input, shape index: {}]
  %s5 = inlined_call_operand.vmem [shape: bf16[2,32,128], index: 5, kind: input, shape index: {}]
  %s6 = inlined_call_operand.vmem [shape: bf16[2,128,32], index: 6, kind: input, shape index: {}]
  %s7 = inlined_call_operand.vmem [shape: bf16[32,32], index: 7, kind: input, shape index: {}]
  %s8 = inlined_call_operand.hbm [shape: bf16[32,128], index: 8, kind: input, shape index: {}]
  %s9 = inlined_call_operand.hbm [shape: f32[2,128], index: 9, kind: output, shape index: {}]
  %s10 = sld [smem:[#allocation0]]
  $region50: #{tpu_custom_call.1} parent=0
    _
  %s12 = ssub.s32 1, %s10
  %s13 = scalar_select 0, %s12, %s10
  $region1: #{tpu_custom_call.1} parent=0
    #allocation2 [shape = 'u8[8192]{0}', space=vmem, size = 0x2000, scoped, tag = 'input window, operand 8, single buffered']
    #allocation3 [shape = 's32[1]{0}', space=sflag, size = 0x4, scoped, tag = 'scoped memory for tpu_custom_call.1']
    #allocation4 [shape = 's32[1]{0}', space=sflag, size = 0x4, scoped, tag = 'scoped memory for tpu_custom_call.1']
    #allocation5 [shape = 'u8[1024]{0}', space=vmem, size = 0x400, scoped, tag = 'output window, operand 0, single buffered']
    %14 = vsyncpa [#allocation3], 0
    %15 = vsyncpa [#allocation4], 0
    // Predicated region
    $region2: #{tpu_custom_call.1} parent=1 // pred_check
      _
    $region3: #{tpu_custom_call.1} parent=1 // pred_check_branch
      %17 = sbr.rel (0) target = $region5
    $region4: #{tpu_custom_call.1} parent=1 // pred_region
      _
    $region5: #{tpu_custom_call.1} parent=1 // pred_fallthru
      _
    // Predicated region
    $region6: #{tpu_custom_call.1} parent=1 // pred_check
      _
    $region7: #{tpu_custom_call.1} parent=1 // pred_check_branch
      %19 = sbr.rel (0) target = $region9
    $region8: #{tpu_custom_call.1} parent=1 // pred_region
      _
    $region9: #{tpu_custom_call.1} parent=1 // pred_fallthru
      _
    // Predicated region
    $region10: #{tpu_custom_call.1} parent=1 // pred_check
      _
    $region11: #{tpu_custom_call.1} parent=1 // pred_check_branch
      %21 = sbr.rel (0) target = $region13
    $region12: #{tpu_custom_call.1} parent=1 // pred_region
      _
    $region13: #{tpu_custom_call.1} parent=1 // pred_fallthru
      _
    // Predicated region
    $region14: #{tpu_custom_call.1} parent=1 // pred_check
      _
    $region15: #{tpu_custom_call.1} parent=1 // pred_check_branch
      %23 = sbr.rel (0) target = $region17
    $region16: #{tpu_custom_call.1} parent=1 // pred_region
      _
    $region17: #{tpu_custom_call.1} parent=1 // pred_fallthru
      _
    // Predicated region
    $region18: #{tpu_custom_call.1} parent=1 // pred_check
      _
    $region19: #{tpu_custom_call.1} parent=1 // pred_check_branch
      %25 = sbr.rel (0) target = $region21
    $region20: #{tpu_custom_call.1} parent=1 // pred_region
      _
    $region21: #{tpu_custom_call.1} parent=1 // pred_fallthru
      _
    // Predicated region
    $region22: #{tpu_custom_call.1} parent=1 // pred_check
      _
    $region23: #{tpu_custom_call.1} parent=1 // pred_check_branch
      %27 = sbr.rel (0) target = $region25
    $region24: #{tpu_custom_call.1} parent=1 // pred_region
      _
    $region25: #{tpu_custom_call.1} parent=1 // pred_fallthru
      _
    // Predicated region
    $region26: #{tpu_custom_call.1} parent=1 // pred_check
      _
    $region27: #{tpu_custom_call.1} parent=1 // pred_check_branch
      %29 = sbr.rel (0) target = $region29
    $region28: #{tpu_custom_call.1} parent=1 // pred_region
      _
    $region29: #{tpu_custom_call.1} parent=1 // pred_fallthru
      _
    // Predicated region
    $region30: #{tpu_custom_call.1} parent=1 // pred_check
      _
    $region31: #{tpu_custom_call.1} parent=1 // pred_check_branch
      %31 = sbr.rel (0) target = $region33
    $region32: #{tpu_custom_call.1} parent=1 // pred_region
      _
    $region33: #{tpu_custom_call.1} parent=1 // pred_fallthru
      _
    // Predicated region
    $region34: #{tpu_custom_call.1} parent=1 // pred_check
      _
    $region35: #{tpu_custom_call.1} parent=1 // pred_check_branch
      %33 = sbr.rel (0) target = $region37
    $region36: #{tpu_custom_call.1} parent=1 // pred_region
      %35 = vsyncadd [#allocation3], 0
      %s36 = sshll.u32 %s8, 4
      %s37 = int_to_ptr.hbm [resolvable:$true] %s36
      %s38 = sshll.u32 [#allocation2], 4
      %s39 = int_to_ptr.vmem [resolvable:$true] %s38
      %44 = dma.hbm_to_vmem [thread:$0]  %s37, 256, %s39, [#allocation3], 64, 64, 4
    $region37: #{tpu_custom_call.1} parent=1 // pred_fallthru
      _
    // Predicated region
    $region38: #{tpu_custom_call.1} parent=1 // pred_check
      _
    $region39: #{tpu_custom_call.1} parent=1 // pred_check_branch
      %46 = sbr.rel (0) target = $region41
    $region40: #{tpu_custom_call.1} parent=1 // pred_region
      %48 = dma.done [#allocation3], 256
    $region41: #{tpu_custom_call.1} parent=1 // pred_fallthru
      _
    %v50 = vld [vmem:[%s2] sm:$0xff]
    %v51 = vld [vmem:[%s2 + $0x8] sm:$0xff]
    %v52 = vld [vmem:[%s2 + $0x10] sm:$0xff]
    %v53 = vld [vmem:[%s1] sm:$0x3]
    %v55 = vrot.slane %v53, 1
    %v56 = vperm.slane %v53, 0
    %v57 = vperm.slane %v55, 0
    %v60 = vld [vmem:[%s0] sm:$0xff]
    %v61 = vld [vmem:[%s0 + $0x8] sm:$0xff]
    %vm62 = vcmask 261120
    %v63 = vsel %vm62, %v60, 0.0
    %64 = vadd.xlane.f32.xlu0 %v63
    %v65 = vpop.xlane.xlu0 %64
    %v66 = vsel %vm62, %v61, 0.0
    %67 = vadd.xlane.f32.xlu0 %v66
    %v68 = vpop.xlane.xlu0 %67
    %v69 = vrcp.pop 32.0
    %v70 = vmul.f32 32.0, %v69
    %v71 = vsub.f32 1.0, %v70
    %v72 = vmul.f32 %v69, %v71
    %v73 = vadd.f32 %v69, %v72
    %vm74 = vweird.f32 %v69
    %v75 = vsel %vm74, %v69, %v73
    %v76 = vmul.f32 %v65, %v75
    %v77 = vmul.f32 %v68, %v75
    %v78 = vsub.f32 %v60, %v76
    %v79 = vsub.f32 %v61, %v77
    %v80 = vmul.f32 %v78, %v78
    %v81 = vmul.f32 %v79, %v79
    %v82 = vsel %vm62, %v80, 0.0
    %83 = vadd.xlane.f32.xlu0 %v82
    %v84 = vpop.xlane.xlu0 %83
    %v85 = vsel %vm62, %v81, 0.0
    %86 = vadd.xlane.f32.xlu0 %v85
    %v87 = vpop.xlane.xlu0 %86
    %v88 = vmul.f32 %v84, %v75
    %v89 = vmul.f32 %v87, %v75
    %v90 = vadd.f32 %v88, 1e-12
    %v91 = vadd.f32 %v89, 1e-12
    %v92 = vrsqrt.pop %v90
    %v93 = vmul.f32 %v92, %v90
    %v94 = vmul.f32 %v93, %v92
    %v95 = vmul.f32 0.5, %v94
    %v96 = vsub.f32 1.5, %v95
    %v97 = vmul.f32 %v92, %v96
    %vm98 = vweird.f32 %v90
    %vm99 = vweird.f32 %v92
    %vm100 = vmor %vm98, %vm99
    %v101 = vsel %vm100, %v92, %v97
    %v102 = vrsqrt.pop %v91
    %v103 = vmul.f32 %v102, %v91
    %v104 = vmul.f32 %v103, %v102
    %v105 = vmul.f32 0.5, %v104
    %v106 = vsub.f32 1.5, %v105
    %v107 = vmul.f32 %v102, %v106
    %vm108 = vweird.f32 %v91
    %vm109 = vweird.f32 %v102
    %vm110 = vmor %vm108, %vm109
    %v111 = vsel %vm110, %v102, %v107
    %v112 = vmul.f32 %v78, %v101
    %v113 = vmul.f32 %v79, %v111
    %v114 = vperm.slane %v50, 0
    %v115 = vmul.f32 %v112, %v114
    %v116 = vmul.f32 %v113, %v114
    %v117 = vperm.slane %v50, 1
    %v118 = vadd.f32 %v115, %v117
    %v119 = vadd.f32 %v116, %v117
    %v120 = vpack.c.bf16 %v119, %v118
    %v121 = vld [vmem:[%s3] sm:$0xf]
    %v122 = vld [vmem:[%s3 + $0x4] sm:$0xf]
    %v123 = vld [vmem:[%s3 + $0x8] sm:$0xf]
    %v124 = vld [vmem:[%s3 + $0xc] sm:$0xf]
    %v125 = vperm.slane %v50, 4
    %v130 = vunpack.c.l.b16 %v121
    %v131 = vunpack.c.l.b16 %v122
    %v132 = vunpack.c.l.b16 %v123
    %v133 = vunpack.c.l.b16 %v124
    %v134 = vpack.c.b16 %v131, %v130
    %v135 = vpack.c.b16 %v133, %v132
    %v139 = vsel %vm62, %v120, 0
    %141 = vmatpush.bf16.msra.mxu0 0
    %142 = vmatpush.bf16.msra.mxu0 0
    %143 = vmatpush.bf16.msra.mxu0 0
    %144 = vmatpush.bf16.msra.mxu0 0
    %145 = vmatpush.bf16.msra.mxu0 0
    %146 = vmatpush.bf16.msra.mxu0 0
    %147 = vmatpush.bf16.msra.mxu0 %v135
    %148 = vmatpush.bf16.msra.mxu0 %v134
    %149 = vmatmul.bf16.gmra.mxu0 %v139
    %v150 = vpop.f32.mrf.mxu0
    %v151 = vadd.f32 %v125, %v150
    %v152 = vpop.f32.mrf.mxu0
    %v153 = vadd.f32 %v125, %v152
    %154 = vdwg.mxu0
    %v155 = vpack.c.bf16 %v151, %v151
    %v156 = vpack.c.bf16 %v153, %v153
    %159 = vrot.lane.b32.xlu0 %v155, 120
    %v160 = vpop.permute.xlu0 %159
    %161 = vrot.lane.b32.xlu0 %v156, 120
    %v162 = vpop.permute.xlu0 %161
    %163 = vrot.lane.b32.xlu0 %v155, 112
    %v164 = vpop.permute.xlu0 %163
    %165 = vrot.lane.b32.xlu0 %v156, 112
    %v166 = vpop.permute.xlu0 %165
    %167 = vrot.lane.b32.xlu0 %v155, 104
    %v168 = vpop.permute.xlu0 %167
    %169 = vrot.lane.b32.xlu0 %v156, 104
    %v170 = vpop.permute.xlu0 %169
    %v171 = vunpack.c.l.b16 %v155
    %v172 = vpack.c.b16 %v171, %v171
    %173 = vrot.lane.b32.xlu0 %v172, 96
    %v174 = vpop.permute.xlu0 %173
    %vm175 = vcmask 64512
    %v177 = vsel %vm175, %v155, 0
    %v180 = vsel %vm175, %v174, 0
    %182 = vmatpush.bf16.xpose.msra.mxu0 0
    %183 = vmatpush.bf16.xpose.msra.mxu0 0
    %184 = vmatpush.bf16.xpose.msra.mxu0 0
    %185 = vmatpush.bf16.xpose.msra.mxu0 0
    %186 = vmatpush.bf16.xpose.msra.mxu0 0
    %187 = vmatpush.bf16.xpose.msra.mxu0 0
    %188 = vmatpush.bf16.xpose.msra.mxu0 0
    %189 = vmatpush.bf16.xpose.msra.mxu0 %v180
    %190 = vmatmul.bf16.gmra.mxu0 %v177
    %v191 = vpop.f32.mrf.mxu0
    %v192 = vadd.f32 0.0, %v191
    %v193 = vpop.f32.mrf.mxu0
    %194 = vdwg.mxu0
    %v195 = vunpack.c.l.b16 %v156
    %v196 = vpack.c.b16 %v195, %v195
    %197 = vrot.lane.b32.xlu0 %v196, 96
    %v198 = vpop.permute.xlu0 %197
    %v200 = vsel %vm175, %v156, 0
    %v203 = vsel %vm175, %v198, 0
    %205 = vmatpush.bf16.xpose.msra.mxu0 0
    %206 = vmatpush.bf16.xpose.msra.mxu0 0
    %207 = vmatpush.bf16.xpose.msra.mxu0 0
    %208 = vmatpush.bf16.xpose.msra.mxu0 0
    %209 = vmatpush.bf16.xpose.msra.mxu0 0
    %210 = vmatpush.bf16.xpose.msra.mxu0 0
    %211 = vmatpush.bf16.xpose.msra.mxu0 0
    %212 = vmatpush.bf16.xpose.msra.mxu0 %v203
    %213 = vmatmul.bf16.gmra.mxu0 %v200
    %v214 = vpop.f32.mrf.mxu0
    %v215 = vadd.f32 0.0, %v214
    %v216 = vpop.f32.mrf.mxu0
    %217 = vdwg.mxu0
    %v218 = vunpack.c.l.b16 %v160
    %v219 = vpack.c.b16 %v218, %v218
    %220 = vrot.lane.b32.xlu0 %v219, 96
    %v221 = vpop.permute.xlu0 %220
    %v223 = vsel %vm175, %v160, 0
    %v226 = vsel %vm175, %v221, 0
    %228 = vmatpush.bf16.xpose.msra.mxu0 0
    %229 = vmatpush.bf16.xpose.msra.mxu0 0
    %230 = vmatpush.bf16.xpose.msra.mxu0 0
    %231 = vmatpush.bf16.xpose.msra.mxu0 0
    %232 = vmatpush.bf16.xpose.msra.mxu0 0
    %233 = vmatpush.bf16.xpose.msra.mxu0 0
    %234 = vmatpush.bf16.xpose.msra.mxu0 0
    %235 = vmatpush.bf16.xpose.msra.mxu0 %v226
    %236 = vmatmul.bf16.gmra.mxu0 %v223
    %v237 = vpop.f32.mrf.mxu0
    %v238 = vadd.f32 0.0, %v237
    %v239 = vpop.f32.mrf.mxu0
    %240 = vdwg.mxu0
    %v241 = vunpack.c.l.b16 %v162
    %v242 = vpack.c.b16 %v241, %v241
    %243 = vrot.lane.b32.xlu0 %v242, 96
    %v244 = vpop.permute.xlu0 %243
    %v246 = vsel %vm175, %v162, 0
    %v249 = vsel %vm175, %v244, 0
    %251 = vmatpush.bf16.xpose.msra.mxu0 0
    %252 = vmatpush.bf16.xpose.msra.mxu0 0
    %253 = vmatpush.bf16.xpose.msra.mxu0 0
    %254 = vmatpush.bf16.xpose.msra.mxu0 0
    %255 = vmatpush.bf16.xpose.msra.mxu0 0
    %256 = vmatpush.bf16.xpose.msra.mxu0 0
    %257 = vmatpush.bf16.xpose.msra.mxu0 0
    %258 = vmatpush.bf16.xpose.msra.mxu0 %v249
    %259 = vmatmul.bf16.gmra.mxu0 %v246
    %v260 = vpop.f32.mrf.mxu0
    %v261 = vadd.f32 0.0, %v260
    %v262 = vpop.f32.mrf.mxu0
    %263 = vdwg.mxu0
    %v264 = vunpack.c.l.b16 %v164
    %v265 = vpack.c.b16 %v264, %v264
    %266 = vrot.lane.b32.xlu0 %v265, 96
    %v267 = vpop.permute.xlu0 %266
    %v269 = vsel %vm175, %v164, 0
    %v272 = vsel %vm175, %v267, 0
    %274 = vmatpush.bf16.xpose.msra.mxu0 0
    %275 = vmatpush.bf16.xpose.msra.mxu0 0
    %276 = vmatpush.bf16.xpose.msra.mxu0 0
    %277 = vmatpush.bf16.xpose.msra.mxu0 0
    %278 = vmatpush.bf16.xpose.msra.mxu0 0
    %279 = vmatpush.bf16.xpose.msra.mxu0 0
    %280 = vmatpush.bf16.xpose.msra.mxu0 0
    %281 = vmatpush.bf16.xpose.msra.mxu0 %v272
    %282 = vmatmul.bf16.gmra.mxu0 %v269
    %v283 = vpop.f32.mrf.mxu0
    %v284 = vadd.f32 0.0, %v283
    %v285 = vpop.f32.mrf.mxu0
    %286 = vdwg.mxu0
    %v287 = vunpack.c.l.b16 %v166
    %v288 = vpack.c.b16 %v287, %v287
    %289 = vrot.lane.b32.xlu0 %v288, 96
    %v290 = vpop.permute.xlu0 %289
    %v292 = vsel %vm175, %v166, 0
    %v295 = vsel %vm175, %v290, 0
    %297 = vmatpush.bf16.xpose.msra.mxu0 0
    %298 = vmatpush.bf16.xpose.msra.mxu0 0
    %299 = vmatpush.bf16.xpose.msra.mxu0 0
    %300 = vmatpush.bf16.xpose.msra.mxu0 0
    %301 = vmatpush.bf16.xpose.msra.mxu0 0
    %302 = vmatpush.bf16.xpose.msra.mxu0 0
    %303 = vmatpush.bf16.xpose.msra.mxu0 0
    %304 = vmatpush.bf16.xpose.msra.mxu0 %v295
    %305 = vmatmul.bf16.gmra.mxu0 %v292
    %v306 = vpop.f32.mrf.mxu0
    %v307 = vadd.f32 0.0, %v306
    %v308 = vpop.f32.mrf.mxu0
    %309 = vdwg.mxu0
    %v310 = vunpack.c.l.b16 %v168
    %v311 = vpack.c.b16 %v310, %v310
    %312 = vrot.lane.b32.xlu0 %v311, 96
    %v313 = vpop.permute.xlu0 %312
    %v315 = vsel %vm175, %v168, 0
    %v318 = vsel %vm175, %v313, 0
    %320 = vmatpush.bf16.xpose.msra.mxu0 0
    %321 = vmatpush.bf16.xpose.msra.mxu0 0
    %322 = vmatpush.bf16.xpose.msra.mxu0 0
    %323 = vmatpush.bf16.xpose.msra.mxu0 0
    %324 = vmatpush.bf16.xpose.msra.mxu0 0
    %325 = vmatpush.bf16.xpose.msra.mxu0 0
    %326 = vmatpush.bf16.xpose.msra.mxu0 0
    %327 = vmatpush.bf16.xpose.msra.mxu0 %v318
    %328 = vmatmul.bf16.gmra.mxu0 %v315
    %v329 = vpop.f32.mrf.mxu0
    %v330 = vadd.f32 0.0, %v329
    %v331 = vpop.f32.mrf.mxu0
    %332 = vdwg.mxu0
    %v333 = vunpack.c.l.b16 %v170
    %v334 = vpack.c.b16 %v333, %v333
    %335 = vrot.lane.b32.xlu0 %v334, 96
    %v336 = vpop.permute.xlu0 %335
    %v338 = vsel %vm175, %v170, 0
    %v341 = vsel %vm175, %v336, 0
    %343 = vmatpush.bf16.xpose.msra.mxu0 0
    %344 = vmatpush.bf16.xpose.msra.mxu0 0
    %345 = vmatpush.bf16.xpose.msra.mxu0 0
    %346 = vmatpush.bf16.xpose.msra.mxu0 0
    %347 = vmatpush.bf16.xpose.msra.mxu0 0
    %348 = vmatpush.bf16.xpose.msra.mxu0 0
    %349 = vmatpush.bf16.xpose.msra.mxu0 0
    %350 = vmatpush.bf16.xpose.msra.mxu0 %v341
    %351 = vmatmul.bf16.gmra.mxu0 %v338
    %v352 = vpop.f32.mrf.mxu0
    %v353 = vadd.f32 0.0, %v352
    %v354 = vpop.f32.mrf.mxu0
    %355 = vdwg.mxu0
    %v356 = vmul.f32 %v192, 0.35355338
    %v357 = vmul.f32 %v215, 0.35355338
    %v358 = vmul.f32 %v238, 0.35355338
    %v359 = vmul.f32 %v261, 0.35355338
    %v360 = vmul.f32 %v284, 0.35355338
    %v361 = vmul.f32 %v307, 0.35355338
    %v362 = vmul.f32 %v330, 0.35355338
    %v363 = vmul.f32 %v353, 0.35355338
    %v364 = vadd.f32 %v356, %v56
    %v365 = vadd.f32 %v357, %v57
    %v366 = vadd.f32 %v358, %v56
    %v367 = vadd.f32 %v359, %v57
    %v368 = vadd.f32 %v360, %v56
    %v369 = vadd.f32 %v361, %v57
    %v370 = vadd.f32 %v362, %v56
    %v371 = vadd.f32 %v363, %v57
    %v372 = vsel %vm175, %v364, -inf
    %373 = vmax.xlane.f32.xlu0 %v372
    %v374 = vpop.xlane.xlu0 %373
    %v375 = vsel %vm175, %v365, -inf
    %376 = vmax.xlane.f32.xlu0 %v375
    %v377 = vpop.xlane.xlu0 %376
    %v378 = vsel %vm175, %v366, -inf
    %379 = vmax.xlane.f32.xlu0 %v378
    %v380 = vpop.xlane.xlu0 %379
    %v381 = vsel %vm175, %v367, -inf
    %382 = vmax.xlane.f32.xlu0 %v381
    %v383 = vpop.xlane.xlu0 %382
    %v384 = vsel %vm175, %v368, -inf
    %385 = vmax.xlane.f32.xlu0 %v384
    %v386 = vpop.xlane.xlu0 %385
    %v387 = vsel %vm175, %v369, -inf
    %388 = vmax.xlane.f32.xlu0 %v387
    %v389 = vpop.xlane.xlu0 %388
    %v390 = vsel %vm175, %v370, -inf
    %391 = vmax.xlane.f32.xlu0 %v390
    %v392 = vpop.xlane.xlu0 %391
    %v393 = vsel %vm175, %v371, -inf
    %394 = vmax.xlane.f32.xlu0 %v393
    %v395 = vpop.xlane.xlu0 %394
    %v396 = vsub.f32 %v364, %v374
    %v397 = vsub.f32 %v365, %v377
    %v398 = vsub.f32 %v366, %v380
    %v399 = vsub.f32 %v367, %v383
    %v400 = vsub.f32 %v368, %v386
    %v401 = vsub.f32 %v369, %v389
    %v402 = vsub.f32 %v370, %v392
    %v403 = vsub.f32 %v371, %v395
    %v404 = vmul.f32 %v396, 1.442695
    %v405 = vpow.pop %v404
    %v406 = vmul.f32 %v397, 1.442695
    %v407 = vpow.pop %v406
    %v408 = vmul.f32 %v398, 1.442695
    %v409 = vpow.pop %v408
    %v410 = vmul.f32 %v399, 1.442695
    %v411 = vpow.pop %v410
    %v412 = vmul.f32 %v400, 1.442695
    %v413 = vpow.pop %v412
    %v414 = vmul.f32 %v401, 1.442695
    %v415 = vpow.pop %v414
    %v416 = vmul.f32 %v402, 1.442695
    %v417 = vpow.pop %v416
    %v418 = vmul.f32 %v403, 1.442695
    %v419 = vpow.pop %v418
    %v420 = vsel %vm175, %v405, 0.0
    %421 = vadd.xlane.f32.xlu0 %v420
    %v422 = vpop.xlane.xlu0 %421
    %v423 = vsel %vm175, %v407, 0.0
    %424 = vadd.xlane.f32.xlu0 %v423
    %v425 = vpop.xlane.xlu0 %424
    %v426 = vsel %vm175, %v409, 0.0
    %427 = vadd.xlane.f32.xlu0 %v426
    %v428 = vpop.xlane.xlu0 %427
    %v429 = vsel %vm175, %v411, 0.0
    %430 = vadd.xlane.f32.xlu0 %v429
    %v431 = vpop.xlane.xlu0 %430
    %v432 = vsel %vm175, %v413, 0.0
    %433 = vadd.xlane.f32.xlu0 %v432
    %v434 = vpop.xlane.xlu0 %433
    %v435 = vsel %vm175, %v415, 0.0
    %436 = vadd.xlane.f32.xlu0 %v435
    %v437 = vpop.xlane.xlu0 %436
    %v438 = vsel %vm175, %v417, 0.0
    %439 = vadd.xlane.f32.xlu0 %v438
    %v440 = vpop.xlane.xlu0 %439
    %v441 = vsel %vm175, %v419, 0.0
    %442 = vadd.xlane.f32.xlu0 %v441
    %v443 = vpop.xlane.xlu0 %442
    %v444 = vrcp.pop %v422
    %v445 = vrcp.pop %v425
    %v446 = vrcp.pop %v428
    %v447 = vrcp.pop %v431
    %v448 = vrcp.pop %v434
    %v449 = vrcp.pop %v437
    %v450 = vrcp.pop %v440
    %v451 = vrcp.pop %v443
    %v452 = vmul.f32 %v405, %v444
    %v453 = vmul.f32 %v407, %v445
    %v454 = vmul.f32 %v409, %v446
    %v455 = vmul.f32 %v411, %v447
    %v456 = vmul.f32 %v413, %v448
    %v457 = vmul.f32 %v415, %v449
    %v458 = vmul.f32 %v417, %v450
    %v459 = vmul.f32 %v419, %v451
    %v460 = vpack.c.bf16 %v452, %v452
    %v461 = vpack.c.bf16 %v453, %v453
    %v462 = vpack.c.bf16 %v454, %v454
    %v463 = vpack.c.bf16 %v455, %v455
    %v464 = vpack.c.bf16 %v456, %v456
    %v465 = vpack.c.bf16 %v457, %v457
    %v466 = vpack.c.bf16 %v458, %v458
    %v467 = vpack.c.bf16 %v459, %v459
    %468 = vrot.lane.b32.xlu0 %v172, 64
    %v469 = vpop.permute.xlu0 %468
    %v471 = vsel %vm175, %v460, 0
    %vm473 = vcmask 1043456
    %v475 = vsel %vm473, %v469, 0
    %477 = vmatpush.bf16.msra.mxu0 0
    %478 = vmatpush.bf16.msra.mxu0 0
    %479 = vmatpush.bf16.msra.mxu0 0
    %480 = vmatpush.bf16.msra.mxu0 0
    %481 = vmatpush.bf16.msra.mxu0 0
    %482 = vmatpush.bf16.msra.mxu0 0
    %483 = vmatpush.bf16.msra.mxu0 0
    %484 = vmatpush.bf16.msra.mxu0 %v475
    %485 = vmatmul.bf16.gmra.mxu0 %v471
    %v486 = vpop.f32.mrf.mxu0
    %v487 = vadd.f32 0.0, %v486
    %v488 = vpop.f32.mrf.mxu0
    %489 = vdwg.mxu0
    %490 = vrot.lane.b32.xlu0 %v196, 64
    %v491 = vpop.permute.xlu0 %490
    %v493 = vsel %vm175, %v461, 0
    %v496 = vsel %vm473, %v491, 0
    %498 = vmatpush.bf16.msra.mxu0 0
    %499 = vmatpush.bf16.msra.mxu0 0
    %500 = vmatpush.bf16.msra.mxu0 0
    %501 = vmatpush.bf16.msra.mxu0 0
    %502 = vmatpush.bf16.msra.mxu0 0
    %503 = vmatpush.bf16.msra.mxu0 0
    %504 = vmatpush.bf16.msra.mxu0 0
    %505 = vmatpush.bf16.msra.mxu0 %v496
    %506 = vmatmul.bf16.gmra.mxu0 %v493
    %v507 = vpop.f32.mrf.mxu0
    %v508 = vadd.f32 0.0, %v507
    %v509 = vpop.f32.mrf.mxu0
    %510 = vdwg.mxu0
    %511 = vrot.lane.b32.xlu0 %v219, 64
    %v512 = vpop.permute.xlu0 %511
    %v514 = vsel %vm175, %v462, 0
    %v517 = vsel %vm473, %v512, 0
    %519 = vmatpush.bf16.msra.mxu0 0
    %520 = vmatpush.bf16.msra.mxu0 0
    %521 = vmatpush.bf16.msra.mxu0 0
    %522 = vmatpush.bf16.msra.mxu0 0
    %523 = vmatpush.bf16.msra.mxu0 0
    %524 = vmatpush.bf16.msra.mxu0 0
    %525 = vmatpush.bf16.msra.mxu0 0
    %526 = vmatpush.bf16.msra.mxu0 %v517
    %527 = vmatmul.bf16.gmra.mxu0 %v514
    %v528 = vpop.f32.mrf.mxu0
    %v529 = vadd.f32 0.0, %v528
    %v530 = vpop.f32.mrf.mxu0
    %531 = vdwg.mxu0
    %532 = vrot.lane.b32.xlu0 %v242, 64
    %v533 = vpop.permute.xlu0 %532
    %v535 = vsel %vm175, %v463, 0
    %v538 = vsel %vm473, %v533, 0
    %540 = vmatpush.bf16.msra.mxu0 0
    %541 = vmatpush.bf16.msra.mxu0 0
    %542 = vmatpush.bf16.msra.mxu0 0
    %543 = vmatpush.bf16.msra.mxu0 0
    %544 = vmatpush.bf16.msra.mxu0 0
    %545 = vmatpush.bf16.msra.mxu0 0
    %546 = vmatpush.bf16.msra.mxu0 0
    %547 = vmatpush.bf16.msra.mxu0 %v538
    %548 = vmatmul.bf16.gmra.mxu0 %v535
    %v549 = vpop.f32.mrf.mxu0
    %v550 = vadd.f32 0.0, %v549
    %v551 = vpop.f32.mrf.mxu0
    %552 = vdwg.mxu0
    %553 = vrot.lane.b32.xlu0 %v265, 64
    %v554 = vpop.permute.xlu0 %553
    %v556 = vsel %vm175, %v464, 0
    %v559 = vsel %vm473, %v554, 0
    %561 = vmatpush.bf16.msra.mxu0 0
    %562 = vmatpush.bf16.msra.mxu0 0
    %563 = vmatpush.bf16.msra.mxu0 0
    %564 = vmatpush.bf16.msra.mxu0 0
    %565 = vmatpush.bf16.msra.mxu0 0
    %566 = vmatpush.bf16.msra.mxu0 0
    %567 = vmatpush.bf16.msra.mxu0 0
    %568 = vmatpush.bf16.msra.mxu0 %v559
    %569 = vmatmul.bf16.gmra.mxu0 %v556
    %v570 = vpop.f32.mrf.mxu0
    %v571 = vadd.f32 0.0, %v570
    %v572 = vpop.f32.mrf.mxu0
    %573 = vdwg.mxu0
    %574 = vrot.lane.b32.xlu0 %v288, 64
    %v575 = vpop.permute.xlu0 %574
    %v577 = vsel %vm175, %v465, 0
    %v580 = vsel %vm473, %v575, 0
    %582 = vmatpush.bf16.msra.mxu0 0
    %583 = vmatpush.bf16.msra.mxu0 0
    %584 = vmatpush.bf16.msra.mxu0 0
    %585 = vmatpush.bf16.msra.mxu0 0
    %586 = vmatpush.bf16.msra.mxu0 0
    %587 = vmatpush.bf16.msra.mxu0 0
    %588 = vmatpush.bf16.msra.mxu0 0
    %589 = vmatpush.bf16.msra.mxu0 %v580
    %590 = vmatmul.bf16.gmra.mxu0 %v577
    %v591 = vpop.f32.mrf.mxu0
    %v592 = vadd.f32 0.0, %v591
    %v593 = vpop.f32.mrf.mxu0
    %594 = vdwg.mxu0
    %595 = vrot.lane.b32.xlu0 %v311, 64
    %v596 = vpop.permute.xlu0 %595
    %v598 = vsel %vm175, %v466, 0
    %v601 = vsel %vm473, %v596, 0
    %603 = vmatpush.bf16.msra.mxu0 0
    %604 = vmatpush.bf16.msra.mxu0 0
    %605 = vmatpush.bf16.msra.mxu0 0
    %606 = vmatpush.bf16.msra.mxu0 0
    %607 = vmatpush.bf16.msra.mxu0 0
    %608 = vmatpush.bf16.msra.mxu0 0
    %609 = vmatpush.bf16.msra.mxu0 0
    %610 = vmatpush.bf16.msra.mxu0 %v601
    %611 = vmatmul.bf16.gmra.mxu0 %v598
    %v612 = vpop.f32.mrf.mxu0
    %v613 = vadd.f32 0.0, %v612
    %v614 = vpop.f32.mrf.mxu0
    %615 = vdwg.mxu0
    %616 = vrot.lane.b32.xlu0 %v334, 64
    %v617 = vpop.permute.xlu0 %616
    %v619 = vsel %vm175, %v467, 0
    %v622 = vsel %vm473, %v617, 0
    %624 = vmatpush.bf16.msra.mxu0 0
    %625 = vmatpush.bf16.msra.mxu0 0
    %626 = vmatpush.bf16.msra.mxu0 0
    %627 = vmatpush.bf16.msra.mxu0 0
    %628 = vmatpush.bf16.msra.mxu0 0
    %629 = vmatpush.bf16.msra.mxu0 0
    %630 = vmatpush.bf16.msra.mxu0 0
    %631 = vmatpush.bf16.msra.mxu0 %v622
    %632 = vmatmul.bf16.gmra.mxu0 %v619
    %v633 = vpop.f32.mrf.mxu0
    %v634 = vadd.f32 0.0, %v633
    %v635 = vpop.f32.mrf.mxu0
    %636 = vdwg.mxu0
    %639 = vrot.lane.b32.xlu0 %v529, 8
    %v640 = vpop.permute.xlu0 %639
    %641 = vrot.lane.b32.xlu0 %v550, 8
    %v642 = vpop.permute.xlu0 %641
    %647 = vrot.lane.b32.xlu0 %v571, 16
    %v648 = vpop.permute.xlu0 %647
    %649 = vrot.lane.b32.xlu0 %v592, 16
    %v650 = vpop.permute.xlu0 %649
    %655 = vrot.lane.b32.xlu0 %v613, 24
    %v656 = vpop.permute.xlu0 %655
    %657 = vrot.lane.b32.xlu0 %v634, 24
    %v658 = vpop.permute.xlu0 %657
    %v661 = vsel %vm175, %v487, %v640
    %v662 = vsel %vm175, %v508, %v642
    %vm663 = vcmask 130048
    %v664 = vsel %vm663, %v661, %v648
    %v665 = vsel %vm663, %v662, %v650
    %vm666 = vcmask 195584
    %v667 = vsel %vm666, %v664, %v656
    %v668 = vsel %vm666, %v665, %v658
    %v669 = vpack.c.bf16 %v668, %v667
    %v670 = vld [vmem:[%s4] sm:$0xf]
    %v671 = vld [vmem:[%s4 + $0x4] sm:$0xf]
    %v672 = vld [vmem:[%s4 + $0x8] sm:$0xf]
    %v673 = vld [vmem:[%s4 + $0xc] sm:$0xf]
    %v674 = vperm.slane %v50, 5
    %v679 = vunpack.c.l.b16 %v670
    %v680 = vunpack.c.l.b16 %v671
    %v681 = vunpack.c.l.b16 %v672
    %v682 = vunpack.c.l.b16 %v673
    %v683 = vpack.c.b16 %v680, %v679
    %v684 = vpack.c.b16 %v682, %v681
    %v688 = vsel %vm62, %v669, 0
    %690 = vmatpush.bf16.msra.mxu0 0
    %691 = vmatpush.bf16.msra.mxu0 0
    %692 = vmatpush.bf16.msra.mxu0 0
    %693 = vmatpush.bf16.msra.mxu0 0
    %694 = vmatpush.bf16.msra.mxu0 0
    %695 = vmatpush.bf16.msra.mxu0 0
    %696 = vmatpush.bf16.msra.mxu0 %v684
    %697 = vmatpush.bf16.msra.mxu0 %v683
    %698 = vmatmul.bf16.gmra.mxu0 %v688
    %v699 = vpop.f32.mrf.mxu0
    %v700 = vadd.f32 %v674, %v699
    %v701 = vpop.f32.mrf.mxu0
    %v702 = vadd.f32 %v674, %v701
    %703 = vdwg.mxu0
    %v704 = vadd.f32 %v118, %v700
    %v705 = vadd.f32 %v119, %v702
    %v706 = vsel %vm62, %v704, 0.0
    %707 = vadd.xlane.f32.xlu0 %v706
    %v708 = vpop.xlane.xlu0 %707
    %v709 = vsel %vm62, %v705, 0.0
    %710 = vadd.xlane.f32.xlu0 %v709
    %v711 = vpop.xlane.xlu0 %710
    %v712 = vmul.f32 %v708, %v75
    %v713 = vmul.f32 %v711, %v75
    %v714 = vsub.f32 %v704, %v712
    %v715 = vsub.f32 %v705, %v713
    %v716 = vmul.f32 %v714, %v714
    %v717 = vmul.f32 %v715, %v715
    %v718 = vsel %vm62, %v716, 0.0
    %719 = vadd.xlane.f32.xlu0 %v718
    %v720 = vpop.xlane.xlu0 %719
    %v721 = vsel %vm62, %v717, 0.0
    %722 = vadd.xlane.f32.xlu0 %v721
    %v723 = vpop.xlane.xlu0 %722
    %v724 = vmul.f32 %v720, %v75
    %v725 = vmul.f32 %v723, %v75
    %v726 = vadd.f32 %v724, 1e-12
    %v727 = vadd.f32 %v725, 1e-12
    %v728 = vrsqrt.pop %v726
    %v729 = vmul.f32 %v728, %v726
    %v730 = vmul.f32 %v729, %v728
    %v731 = vmul.f32 0.5, %v730
    %v732 = vsub.f32 1.5, %v731
    %v733 = vmul.f32 %v728, %v732
    %vm734 = vweird.f32 %v726
    %vm735 = vweird.f32 %v728
    %vm736 = vmor %vm734, %vm735
    %v737 = vsel %vm736, %v728, %v733
    %v738 = vrsqrt.pop %v727
    %v739 = vmul.f32 %v738, %v727
    %v740 = vmul.f32 %v739, %v738
    %v741 = vmul.f32 0.5, %v740
    %v742 = vsub.f32 1.5, %v741
    %v743 = vmul.f32 %v738, %v742
    %vm744 = vweird.f32 %v727
    %vm745 = vweird.f32 %v738
    %vm746 = vmor %vm744, %vm745
    %v747 = vsel %vm746, %v738, %v743
    %v748 = vmul.f32 %v714, %v737
    %v749 = vmul.f32 %v715, %v747
    %v750 = vperm.slane %v50, 6
    %v751 = vmul.f32 %v748, %v750
    %v752 = vmul.f32 %v749, %v750
    %v753 = vperm.slane %v50, 7
    %v754 = vadd.f32 %v751, %v753
    %v755 = vadd.f32 %v752, %v753
    %v756 = vpack.c.bf16 %v755, %v754
    %v757 = vld [vmem:[%s5] sm:$0xf]
    %v758 = vld [vmem:[%s5 + $0x4] sm:$0xf]
    %v759 = vld [vmem:[%s5 + $0x8] sm:$0xf]
    %v760 = vld [vmem:[%s5 + $0xc] sm:$0xf]
    %v761 = vperm.slane %v51, 0
    %v766 = vunpack.c.l.b16 %v757
    %v767 = vunpack.c.l.b16 %v758
    %v768 = vunpack.c.l.b16 %v759
    %v769 = vunpack.c.l.b16 %v760
    %v770 = vpack.c.b16 %v767, %v766
    %v771 = vpack.c.b16 %v769, %v768
    %v775 = vsel %vm62, %v756, 0
    %777 = vmatpush.bf16.msra.mxu0 0
    %778 = vmatpush.bf16.msra.mxu0 0
    %779 = vmatpush.bf16.msra.mxu0 0
    %780 = vmatpush.bf16.msra.mxu0 0
    %781 = vmatpush.bf16.msra.mxu0 0
    %782 = vmatpush.bf16.msra.mxu0 0
    %783 = vmatpush.bf16.msra.mxu0 %v771
    %784 = vmatpush.bf16.msra.mxu0 %v770
    %785 = vmatmul.bf16.gmra.mxu0 %v775
    %v786 = vpop.f32.mrf.mxu0
    %v787 = vadd.f32 %v761, %v786
    %v788 = vpop.f32.mrf.mxu0
    %v789 = vadd.f32 %v761, %v788
    %790 = vdwg.mxu0
    %v791 = vmul.f32 %v787, 0.5
    %v792 = vmul.f32 %v789, 0.5
    %v793 = vmul.f32 %v787, 0.044715
    %v794 = vmul.f32 %v789, 0.044715
    %v795 = vmul.f32 %v793, %v787
    %v796 = vmul.f32 %v794, %v789
    %v797 = vmul.f32 %v795, %v787
    %v798 = vmul.f32 %v796, %v789
    %v799 = vadd.f32 %v787, %v797
    %v800 = vadd.f32 %v789, %v798
    %v801 = vmul.f32 %v799, 0.7978846
    %v802 = vmul.f32 %v800, 0.7978846
    %v803 = vtanh.pop %v801
    %v804 = vtanh.pop %v802
    %v805 = vadd.f32 %v803, 1.0
    %v806 = vadd.f32 %v804, 1.0
    %v807 = vmul.f32 %v791, %v805
    %v808 = vmul.f32 %v792, %v806
    %v809 = vpack.c.bf16 %v808, %v807
    %v810 = vld [vmem:[%s6] sm:$0xf]
    %v811 = vld [vmem:[%s6 + $0x4] sm:$0xf]
    %v812 = vld [vmem:[%s6 + $0x8] sm:$0xf]
    %v813 = vld [vmem:[%s6 + $0xc] sm:$0xf]
    %v814 = vld [vmem:[%s6 + $0x10] sm:$0xf]
    %v815 = vld [vmem:[%s6 + $0x14] sm:$0xf]
    %v816 = vld [vmem:[%s6 + $0x18] sm:$0xf]
    %v817 = vld [vmem:[%s6 + $0x1c] sm:$0xf]
    %v818 = vld [vmem:[%s6 + $0x20] sm:$0xf]
    %v819 = vld [vmem:[%s6 + $0x24] sm:$0xf]
    %v820 = vld [vmem:[%s6 + $0x28] sm:$0xf]
    %v821 = vld [vmem:[%s6 + $0x2c] sm:$0xf]
    %v822 = vld [vmem:[%s6 + $0x30] sm:$0xf]
    %v823 = vld [vmem:[%s6 + $0x34] sm:$0xf]
    %v824 = vld [vmem:[%s6 + $0x38] sm:$0xf]
    %v825 = vld [vmem:[%s6 + $0x3c] sm:$0xf]
    %v826 = vperm.slane %v51, 1
    %v843 = vunpack.c.l.b16 %v810
    %v844 = vunpack.c.l.b16 %v811
    %v845 = vunpack.c.l.b16 %v812
    %v846 = vunpack.c.l.b16 %v813
    %v847 = vunpack.c.l.b16 %v814
    %v848 = vunpack.c.l.b16 %v815
    %v849 = vunpack.c.l.b16 %v816
    %v850 = vunpack.c.l.b16 %v817
    %v851 = vunpack.c.l.b16 %v818
    %v852 = vunpack.c.l.b16 %v819
    %v853 = vunpack.c.l.b16 %v820
    %v854 = vunpack.c.l.b16 %v821
    %v855 = vunpack.c.l.b16 %v822
    %v856 = vunpack.c.l.b16 %v823
    %v857 = vunpack.c.l.b16 %v824
    %v858 = vunpack.c.l.b16 %v825
    %v859 = vpack.c.b16 %v844, %v843
    %v860 = vpack.c.b16 %v846, %v845
    %v861 = vpack.c.b16 %v848, %v847
    %v862 = vpack.c.b16 %v850, %v849
    %v863 = vpack.c.b16 %v852, %v851
    %v864 = vpack.c.b16 %v854, %v853
    %v865 = vpack.c.b16 %v856, %v855
    %v866 = vpack.c.b16 %v858, %v857
    %875 = vmatpush.bf16.msra.mxu0 %v866
    %876 = vmatpush.bf16.msra.mxu0 %v865
    %877 = vmatpush.bf16.msra.mxu0 %v864
    %878 = vmatpush.bf16.msra.mxu0 %v863
    %879 = vmatpush.bf16.msra.mxu0 %v862
    %880 = vmatpush.bf16.msra.mxu0 %v861
    %881 = vmatpush.bf16.msra.mxu0 %v860
    %882 = vmatpush.bf16.msra.mxu0 %v859
    %883 = vmatmul.bf16.gmra.mxu0 %v809
    %v884 = vpop.f32.mrf.mxu0
    %v885 = vadd.f32 %v826, %v884
    %v886 = vpop.f32.mrf.mxu0
    %v887 = vadd.f32 %v826, %v886
    %888 = vdwg.mxu0
    %v889 = vadd.f32 %v754, %v885
    %v890 = vadd.f32 %v755, %v887
    %v891 = vsel %vm62, %v889, 0.0
    %892 = vadd.xlane.f32.xlu0 %v891
    %v893 = vpop.xlane.xlu0 %892
    %v894 = vsel %vm62, %v890, 0.0
    %895 = vadd.xlane.f32.xlu0 %v894
    %v896 = vpop.xlane.xlu0 %895
    %v897 = vmul.f32 %v893, %v75
    %v898 = vmul.f32 %v896, %v75
    %v899 = vsub.f32 %v889, %v897
    %v900 = vsub.f32 %v890, %v898
    %v901 = vmul.f32 %v899, %v899
    %v902 = vmul.f32 %v900, %v900
    %v903 = vsel %vm62, %v901, 0.0
    %904 = vadd.xlane.f32.xlu0 %v903
    %v905 = vpop.xlane.xlu0 %904
    %v906 = vsel %vm62, %v902, 0.0
    %907 = vadd.xlane.f32.xlu0 %v906
    %v908 = vpop.xlane.xlu0 %907
    %v909 = vmul.f32 %v905, %v75
    %v910 = vmul.f32 %v908, %v75
    %v911 = vadd.f32 %v909, 1e-12
    %v912 = vadd.f32 %v910, 1e-12
    %v913 = vrsqrt.pop %v911
    %v914 = vmul.f32 %v913, %v911
    %v915 = vmul.f32 %v914, %v913
    %v916 = vmul.f32 0.5, %v915
    %v917 = vsub.f32 1.5, %v916
    %v918 = vmul.f32 %v913, %v917
    %vm919 = vweird.f32 %v911
    %vm920 = vweird.f32 %v913
    %vm921 = vmor %vm919, %vm920
    %v922 = vsel %vm921, %v913, %v918
    %v923 = vrsqrt.pop %v912
    %v924 = vmul.f32 %v923, %v912
    %v925 = vmul.f32 %v924, %v923
    %v926 = vmul.f32 0.5, %v925
    %v927 = vsub.f32 1.5, %v926
    %v928 = vmul.f32 %v923, %v927
    %vm929 = vweird.f32 %v912
    %vm930 = vweird.f32 %v923
    %vm931 = vmor %vm929, %vm930
    %v932 = vsel %vm931, %v923, %v928
    %v933 = vmul.f32 %v899, %v922
    %v934 = vmul.f32 %v900, %v932
    %v935 = vperm.slane %v51, 2
    %v936 = vmul.f32 %v933, %v935
    %v937 = vmul.f32 %v934, %v935
    %v938 = vperm.slane %v51, 3
    %v939 = vadd.f32 %v936, %v938
    %v940 = vadd.f32 %v937, %v938
    %v941 = vpack.c.bf16 %v940, %v939
    %s942 = scalar_lea.vmem %s3, 16
    %v943 = vld [vmem:[%s942] sm:$0xf]
    %v944 = vld [vmem:[%s942 + $0x4] sm:$0xf]
    %v945 = vld [vmem:[%s942 + $0x8] sm:$0xf]
    %v946 = vld [vmem:[%s942 + $0xc] sm:$0xf]
    %v947 = vperm.slane %v51, 4
    %v952 = vunpack.c.l.b16 %v943
    %v953 = vunpack.c.l.b16 %v944
    %v954 = vunpack.c.l.b16 %v945
    %v955 = vunpack.c.l.b16 %v946
    %v956 = vpack.c.b16 %v953, %v952
    %v957 = vpack.c.b16 %v955, %v954
    %v961 = vsel %vm62, %v941, 0
    %963 = vmatpush.bf16.msra.mxu0 0
    %964 = vmatpush.bf16.msra.mxu0 0
    %965 = vmatpush.bf16.msra.mxu0 0
    %966 = vmatpush.bf16.msra.mxu0 0
    %967 = vmatpush.bf16.msra.mxu0 0
    %968 = vmatpush.bf16.msra.mxu0 0
    %969 = vmatpush.bf16.msra.mxu0 %v957
    %970 = vmatpush.bf16.msra.mxu0 %v956
    %971 = vmatmul.bf16.gmra.mxu0 %v961
    %v972 = vpop.f32.mrf.mxu0
    %v973 = vadd.f32 %v947, %v972
    %v974 = vpop.f32.mrf.mxu0
    %v975 = vadd.f32 %v947, %v974
    %976 = vdwg.mxu0
    %v977 = vpack.c.bf16 %v973, %v973
    %v978 = vpack.c.bf16 %v975, %v975
    %981 = vrot.lane.b32.xlu0 %v977, 120
    %v982 = vpop.permute.xlu0 %981
    %983 = vrot.lane.b32.xlu0 %v978, 120
    %v984 = vpop.permute.xlu0 %983
    %985 = vrot.lane.b32.xlu0 %v977, 112
    %v986 = vpop.permute.xlu0 %985
    %987 = vrot.lane.b32.xlu0 %v978, 112
    %v988 = vpop.permute.xlu0 %987
    %989 = vrot.lane.b32.xlu0 %v977, 104
    %v990 = vpop.permute.xlu0 %989
    %991 = vrot.lane.b32.xlu0 %v978, 104
    %v992 = vpop.permute.xlu0 %991
    %v993 = vunpack.c.l.b16 %v977
    %v994 = vpack.c.b16 %v993, %v993
    %995 = vrot.lane.b32.xlu0 %v994, 96
    %v996 = vpop.permute.xlu0 %995
    %v998 = vsel %vm175, %v977, 0
    %v1001 = vsel %vm175, %v996, 0
    %1003 = vmatpush.bf16.xpose.msra.mxu0 0
    %1004 = vmatpush.bf16.xpose.msra.mxu0 0
    %1005 = vmatpush.bf16.xpose.msra.mxu0 0
    %1006 = vmatpush.bf16.xpose.msra.mxu0 0
    %1007 = vmatpush.bf16.xpose.msra.mxu0 0
    %1008 = vmatpush.bf16.xpose.msra.mxu0 0
    %1009 = vmatpush.bf16.xpose.msra.mxu0 0
    %1010 = vmatpush.bf16.xpose.msra.mxu0 %v1001
    %1011 = vmatmul.bf16.gmra.mxu0 %v998
    %v1012 = vpop.f32.mrf.mxu0
    %v1013 = vadd.f32 0.0, %v1012
    %v1014 = vpop.f32.mrf.mxu0
    %1015 = vdwg.mxu0
    %v1016 = vunpack.c.l.b16 %v978
    %v1017 = vpack.c.b16 %v1016, %v1016
    %1018 = vrot.lane.b32.xlu0 %v1017, 96
    %v1019 = vpop.permute.xlu0 %1018
    %v1021 = vsel %vm175, %v978, 0
    %v1024 = vsel %vm175, %v1019, 0
    %1026 = vmatpush.bf16.xpose.msra.mxu0 0
    %1027 = vmatpush.bf16.xpose.msra.mxu0 0
    %1028 = vmatpush.bf16.xpose.msra.mxu0 0
    %1029 = vmatpush.bf16.xpose.msra.mxu0 0
    %1030 = vmatpush.bf16.xpose.msra.mxu0 0
    %1031 = vmatpush.bf16.xpose.msra.mxu0 0
    %1032 = vmatpush.bf16.xpose.msra.mxu0 0
    %1033 = vmatpush.bf16.xpose.msra.mxu0 %v1024
    %1034 = vmatmul.bf16.gmra.mxu0 %v1021
    %v1035 = vpop.f32.mrf.mxu0
    %v1036 = vadd.f32 0.0, %v1035
    %v1037 = vpop.f32.mrf.mxu0
    %1038 = vdwg.mxu0
    %v1039 = vunpack.c.l.b16 %v982
    %v1040 = vpack.c.b16 %v1039, %v1039
    %1041 = vrot.lane.b32.xlu0 %v1040, 96
    %v1042 = vpop.permute.xlu0 %1041
    %v1044 = vsel %vm175, %v982, 0
    %v1047 = vsel %vm175, %v1042, 0
    %1049 = vmatpush.bf16.xpose.msra.mxu0 0
    %1050 = vmatpush.bf16.xpose.msra.mxu0 0
    %1051 = vmatpush.bf16.xpose.msra.mxu0 0
    %1052 = vmatpush.bf16.xpose.msra.mxu0 0
    %1053 = vmatpush.bf16.xpose.msra.mxu0 0
    %1054 = vmatpush.bf16.xpose.msra.mxu0 0
    %1055 = vmatpush.bf16.xpose.msra.mxu0 0
    %1056 = vmatpush.bf16.xpose.msra.mxu0 %v1047
    %1057 = vmatmul.bf16.gmra.mxu0 %v1044
    %v1058 = vpop.f32.mrf.mxu0
    %v1059 = vadd.f32 0.0, %v1058
    %v1060 = vpop.f32.mrf.mxu0
    %1061 = vdwg.mxu0
    %v1062 = vunpack.c.l.b16 %v984
    %v1063 = vpack.c.b16 %v1062, %v1062
    %1064 = vrot.lane.b32.xlu0 %v1063, 96
    %v1065 = vpop.permute.xlu0 %1064
    %v1067 = vsel %vm175, %v984, 0
    %v1070 = vsel %vm175, %v1065, 0
    %1072 = vmatpush.bf16.xpose.msra.mxu0 0
    %1073 = vmatpush.bf16.xpose.msra.mxu0 0
    %1074 = vmatpush.bf16.xpose.msra.mxu0 0
    %1075 = vmatpush.bf16.xpose.msra.mxu0 0
    %1076 = vmatpush.bf16.xpose.msra.mxu0 0
    %1077 = vmatpush.bf16.xpose.msra.mxu0 0
    %1078 = vmatpush.bf16.xpose.msra.mxu0 0
    %1079 = vmatpush.bf16.xpose.msra.mxu0 %v1070
    %1080 = vmatmul.bf16.gmra.mxu0 %v1067
    %v1081 = vpop.f32.mrf.mxu0
    %v1082 = vadd.f32 0.0, %v1081
    %v1083 = vpop.f32.mrf.mxu0
    %1084 = vdwg.mxu0
    %v1085 = vunpack.c.l.b16 %v986
    %v1086 = vpack.c.b16 %v1085, %v1085
    %1087 = vrot.lane.b32.xlu0 %v1086, 96
    %v1088 = vpop.permute.xlu0 %1087
    %v1090 = vsel %vm175, %v986, 0
    %v1093 = vsel %vm175, %v1088, 0
    %1095 = vmatpush.bf16.xpose.msra.mxu0 0
    %1096 = vmatpush.bf16.xpose.msra.mxu0 0
    %1097 = vmatpush.bf16.xpose.msra.mxu0 0
    %1098 = vmatpush.bf16.xpose.msra.mxu0 0
    %1099 = vmatpush.bf16.xpose.msra.mxu0 0
    %1100 = vmatpush.bf16.xpose.msra.mxu0 0
    %1101 = vmatpush.bf16.xpose.msra.mxu0 0
    %1102 = vmatpush.bf16.xpose.msra.mxu0 %v1093
    %1103 = vmatmul.bf16.gmra.mxu0 %v1090
    %v1104 = vpop.f32.mrf.mxu0
    %v1105 = vadd.f32 0.0, %v1104
    %v1106 = vpop.f32.mrf.mxu0
    %1107 = vdwg.mxu0
    %v1108 = vunpack.c.l.b16 %v988
    %v1109 = vpack.c.b16 %v1108, %v1108
    %1110 = vrot.lane.b32.xlu0 %v1109, 96
    %v1111 = vpop.permute.xlu0 %1110
    %v1113 = vsel %vm175, %v988, 0
    %v1116 = vsel %vm175, %v1111, 0
    %1118 = vmatpush.bf16.xpose.msra.mxu0 0
    %1119 = vmatpush.bf16.xpose.msra.mxu0 0
    %1120 = vmatpush.bf16.xpose.msra.mxu0 0
    %1121 = vmatpush.bf16.xpose.msra.mxu0 0
    %1122 = vmatpush.bf16.xpose.msra.mxu0 0
    %1123 = vmatpush.bf16.xpose.msra.mxu0 0
    %1124 = vmatpush.bf16.xpose.msra.mxu0 0
    %1125 = vmatpush.bf16.xpose.msra.mxu0 %v1116
    %1126 = vmatmul.bf16.gmra.mxu0 %v1113
    %v1127 = vpop.f32.mrf.mxu0
    %v1128 = vadd.f32 0.0, %v1127
    %v1129 = vpop.f32.mrf.mxu0
    %1130 = vdwg.mxu0
    %v1131 = vunpack.c.l.b16 %v990
    %v1132 = vpack.c.b16 %v1131, %v1131
    %1133 = vrot.lane.b32.xlu0 %v1132, 96
    %v1134 = vpop.permute.xlu0 %1133
    %v1136 = vsel %vm175, %v990, 0
    %v1139 = vsel %vm175, %v1134, 0
    %1141 = vmatpush.bf16.xpose.msra.mxu0 0
    %1142 = vmatpush.bf16.xpose.msra.mxu0 0
    %1143 = vmatpush.bf16.xpose.msra.mxu0 0
    %1144 = vmatpush.bf16.xpose.msra.mxu0 0
    %1145 = vmatpush.bf16.xpose.msra.mxu0 0
    %1146 = vmatpush.bf16.xpose.msra.mxu0 0
    %1147 = vmatpush.bf16.xpose.msra.mxu0 0
    %1148 = vmatpush.bf16.xpose.msra.mxu0 %v1139
    %1149 = vmatmul.bf16.gmra.mxu0 %v1136
    %v1150 = vpop.f32.mrf.mxu0
    %v1151 = vadd.f32 0.0, %v1150
    %v1152 = vpop.f32.mrf.mxu0
    %1153 = vdwg.mxu0
    %v1154 = vunpack.c.l.b16 %v992
    %v1155 = vpack.c.b16 %v1154, %v1154
    %1156 = vrot.lane.b32.xlu0 %v1155, 96
    %v1157 = vpop.permute.xlu0 %1156
    %v1159 = vsel %vm175, %v992, 0
    %v1162 = vsel %vm175, %v1157, 0
    %1164 = vmatpush.bf16.xpose.msra.mxu0 0
    %1165 = vmatpush.bf16.xpose.msra.mxu0 0
    %1166 = vmatpush.bf16.xpose.msra.mxu0 0
    %1167 = vmatpush.bf16.xpose.msra.mxu0 0
    %1168 = vmatpush.bf16.xpose.msra.mxu0 0
    %1169 = vmatpush.bf16.xpose.msra.mxu0 0
    %1170 = vmatpush.bf16.xpose.msra.mxu0 0
    %1171 = vmatpush.bf16.xpose.msra.mxu0 %v1162
    %1172 = vmatmul.bf16.gmra.mxu0 %v1159
    %v1173 = vpop.f32.mrf.mxu0
    %v1174 = vadd.f32 0.0, %v1173
    %v1175 = vpop.f32.mrf.mxu0
    %1176 = vdwg.mxu0
    %v1177 = vmul.f32 %v1013, 0.35355338
    %v1178 = vmul.f32 %v1036, 0.35355338
    %v1179 = vmul.f32 %v1059, 0.35355338
    %v1180 = vmul.f32 %v1082, 0.35355338
    %v1181 = vmul.f32 %v1105, 0.35355338
    %v1182 = vmul.f32 %v1128, 0.35355338
    %v1183 = vmul.f32 %v1151, 0.35355338
    %v1184 = vmul.f32 %v1174, 0.35355338
    %v1185 = vadd.f32 %v1177, %v56
    %v1186 = vadd.f32 %v1178, %v57
    %v1187 = vadd.f32 %v1179, %v56
    %v1188 = vadd.f32 %v1180, %v57
    %v1189 = vadd.f32 %v1181, %v56
    %v1190 = vadd.f32 %v1182, %v57
    %v1191 = vadd.f32 %v1183, %v56
    %v1192 = vadd.f32 %v1184, %v57
    %v1193 = vsel %vm175, %v1185, -inf
    %1194 = vmax.xlane.f32.xlu0 %v1193
    %v1195 = vpop.xlane.xlu0 %1194
    %v1196 = vsel %vm175, %v1186, -inf
    %1197 = vmax.xlane.f32.xlu0 %v1196
    %v1198 = vpop.xlane.xlu0 %1197
    %v1199 = vsel %vm175, %v1187, -inf
    %1200 = vmax.xlane.f32.xlu0 %v1199
    %v1201 = vpop.xlane.xlu0 %1200
    %v1202 = vsel %vm175, %v1188, -inf
    %1203 = vmax.xlane.f32.xlu0 %v1202
    %v1204 = vpop.xlane.xlu0 %1203
    %v1205 = vsel %vm175, %v1189, -inf
    %1206 = vmax.xlane.f32.xlu0 %v1205
    %v1207 = vpop.xlane.xlu0 %1206
    %v1208 = vsel %vm175, %v1190, -inf
    %1209 = vmax.xlane.f32.xlu0 %v1208
    %v1210 = vpop.xlane.xlu0 %1209
    %v1211 = vsel %vm175, %v1191, -inf
    %1212 = vmax.xlane.f32.xlu0 %v1211
    %v1213 = vpop.xlane.xlu0 %1212
    %v1214 = vsel %vm175, %v1192, -inf
    %1215 = vmax.xlane.f32.xlu0 %v1214
    %v1216 = vpop.xlane.xlu0 %1215
    %v1217 = vsub.f32 %v1185, %v1195
    %v1218 = vsub.f32 %v1186, %v1198
    %v1219 = vsub.f32 %v1187, %v1201
    %v1220 = vsub.f32 %v1188, %v1204
    %v1221 = vsub.f32 %v1189, %v1207
    %v1222 = vsub.f32 %v1190, %v1210
    %v1223 = vsub.f32 %v1191, %v1213
    %v1224 = vsub.f32 %v1192, %v1216
    %v1225 = vmul.f32 %v1217, 1.442695
    %v1226 = vpow.pop %v1225
    %v1227 = vmul.f32 %v1218, 1.442695
    %v1228 = vpow.pop %v1227
    %v1229 = vmul.f32 %v1219, 1.442695
    %v1230 = vpow.pop %v1229
    %v1231 = vmul.f32 %v1220, 1.442695
    %v1232 = vpow.pop %v1231
    %v1233 = vmul.f32 %v1221, 1.442695
    %v1234 = vpow.pop %v1233
    %v1235 = vmul.f32 %v1222, 1.442695
    %v1236 = vpow.pop %v1235
    %v1237 = vmul.f32 %v1223, 1.442695
    %v1238 = vpow.pop %v1237
    %v1239 = vmul.f32 %v1224, 1.442695
    %v1240 = vpow.pop %v1239
    %v1241 = vsel %vm175, %v1226, 0.0
    %1242 = vadd.xlane.f32.xlu0 %v1241
    %v1243 = vpop.xlane.xlu0 %1242
    %v1244 = vsel %vm175, %v1228, 0.0
    %1245 = vadd.xlane.f32.xlu0 %v1244
    %v1246 = vpop.xlane.xlu0 %1245
    %v1247 = vsel %vm175, %v1230, 0.0
    %1248 = vadd.xlane.f32.xlu0 %v1247
    %v1249 = vpop.xlane.xlu0 %1248
    %v1250 = vsel %vm175, %v1232, 0.0
    %1251 = vadd.xlane.f32.xlu0 %v1250
    %v1252 = vpop.xlane.xlu0 %1251
    %v1253 = vsel %vm175, %v1234, 0.0
    %1254 = vadd.xlane.f32.xlu0 %v1253
    %v1255 = vpop.xlane.xlu0 %1254
    %v1256 = vsel %vm175, %v1236, 0.0
    %1257 = vadd.xlane.f32.xlu0 %v1256
    %v1258 = vpop.xlane.xlu0 %1257
    %v1259 = vsel %vm175, %v1238, 0.0
    %1260 = vadd.xlane.f32.xlu0 %v1259
    %v1261 = vpop.xlane.xlu0 %1260
    %v1262 = vsel %vm175, %v1240, 0.0
    %1263 = vadd.xlane.f32.xlu0 %v1262
    %v1264 = vpop.xlane.xlu0 %1263
    %v1265 = vrcp.pop %v1243
    %v1266 = vrcp.pop %v1246
    %v1267 = vrcp.pop %v1249
    %v1268 = vrcp.pop %v1252
    %v1269 = vrcp.pop %v1255
    %v1270 = vrcp.pop %v1258
    %v1271 = vrcp.pop %v1261
    %v1272 = vrcp.pop %v1264
    %v1273 = vmul.f32 %v1226, %v1265
    %v1274 = vmul.f32 %v1228, %v1266
    %v1275 = vmul.f32 %v1230, %v1267
    %v1276 = vmul.f32 %v1232, %v1268
    %v1277 = vmul.f32 %v1234, %v1269
    %v1278 = vmul.f32 %v1236, %v1270
    %v1279 = vmul.f32 %v1238, %v1271
    %v1280 = vmul.f32 %v1240, %v1272
    %v1281 = vpack.c.bf16 %v1273, %v1273
    %v1282 = vpack.c.bf16 %v1274, %v1274
    %v1283 = vpack.c.bf16 %v1275, %v1275
    %v1284 = vpack.c.bf16 %v1276, %v1276
    %v1285 = vpack.c.bf16 %v1277, %v1277
    %v1286 = vpack.c.bf16 %v1278, %v1278
    %v1287 = vpack.c.bf16 %v1279, %v1279
    %v1288 = vpack.c.bf16 %v1280, %v1280
    %1289 = vrot.lane.b32.xlu0 %v994, 64
    %v1290 = vpop.permute.xlu0 %1289
    %v1292 = vsel %vm175, %v1281, 0
    %v1295 = vsel %vm473, %v1290, 0
    %1297 = vmatpush.bf16.msra.mxu0 0
    %1298 = vmatpush.bf16.msra.mxu0 0
    %1299 = vmatpush.bf16.msra.mxu0 0
    %1300 = vmatpush.bf16.msra.mxu0 0
    %1301 = vmatpush.bf16.msra.mxu0 0
    %1302 = vmatpush.bf16.msra.mxu0 0
    %1303 = vmatpush.bf16.msra.mxu0 0
    %1304 = vmatpush.bf16.msra.mxu0 %v1295
    %1305 = vmatmul.bf16.gmra.mxu0 %v1292
    %v1306 = vpop.f32.mrf.mxu0
    %v1307 = vadd.f32 0.0, %v1306
    %v1308 = vpop.f32.mrf.mxu0
    %1309 = vdwg.mxu0
    %1310 = vrot.lane.b32.xlu0 %v1017, 64
    %v1311 = vpop.permute.xlu0 %1310
    %v1313 = vsel %vm175, %v1282, 0
    %v1316 = vsel %vm473, %v1311, 0
    %1318 = vmatpush.bf16.msra.mxu0 0
    %1319 = vmatpush.bf16.msra.mxu0 0
    %1320 = vmatpush.bf16.msra.mxu0 0
    %1321 = vmatpush.bf16.msra.mxu0 0
    %1322 = vmatpush.bf16.msra.mxu0 0
    %1323 = vmatpush.bf16.msra.mxu0 0
    %1324 = vmatpush.bf16.msra.mxu0 0
    %1325 = vmatpush.bf16.msra.mxu0 %v1316
    %1326 = vmatmul.bf16.gmra.mxu0 %v1313
    %v1327 = vpop.f32.mrf.mxu0
    %v1328 = vadd.f32 0.0, %v1327
    %v1329 = vpop.f32.mrf.mxu0
    %1330 = vdwg.mxu0
    %1331 = vrot.lane.b32.xlu0 %v1040, 64
    %v1332 = vpop.permute.xlu0 %1331
    %v1334 = vsel %vm175, %v1283, 0
    %v1337 = vsel %vm473, %v1332, 0
    %1339 = vmatpush.bf16.msra.mxu0 0
    %1340 = vmatpush.bf16.msra.mxu0 0
    %1341 = vmatpush.bf16.msra.mxu0 0
    %1342 = vmatpush.bf16.msra.mxu0 0
    %1343 = vmatpush.bf16.msra.mxu0 0
    %1344 = vmatpush.bf16.msra.mxu0 0
    %1345 = vmatpush.bf16.msra.mxu0 0
    %1346 = vmatpush.bf16.msra.mxu0 %v1337
    %1347 = vmatmul.bf16.gmra.mxu0 %v1334
    %v1348 = vpop.f32.mrf.mxu0
    %v1349 = vadd.f32 0.0, %v1348
    %v1350 = vpop.f32.mrf.mxu0
    %1351 = vdwg.mxu0
    %1352 = vrot.lane.b32.xlu0 %v1063, 64
    %v1353 = vpop.permute.xlu0 %1352
    %v1355 = vsel %vm175, %v1284, 0
    %v1358 = vsel %vm473, %v1353, 0
    %1360 = vmatpush.bf16.msra.mxu0 0
    %1361 = vmatpush.bf16.msra.mxu0 0
    %1362 = vmatpush.bf16.msra.mxu0 0
    %1363 = vmatpush.bf16.msra.mxu0 0
    %1364 = vmatpush.bf16.msra.mxu0 0
    %1365 = vmatpush.bf16.msra.mxu0 0
    %1366 = vmatpush.bf16.msra.mxu0 0
    %1367 = vmatpush.bf16.msra.mxu0 %v1358
    %1368 = vmatmul.bf16.gmra.mxu0 %v1355
    %v1369 = vpop.f32.mrf.mxu0
    %v1370 = vadd.f32 0.0, %v1369
    %v1371 = vpop.f32.mrf.mxu0
    %1372 = vdwg.mxu0
    %1373 = vrot.lane.b32.xlu0 %v1086, 64
    %v1374 = vpop.permute.xlu0 %1373
    %v1376 = vsel %vm175, %v1285, 0
    %v1379 = vsel %vm473, %v1374, 0
    %1381 = vmatpush.bf16.msra.mxu0 0
    %1382 = vmatpush.bf16.msra.mxu0 0
    %1383 = vmatpush.bf16.msra.mxu0 0
    %1384 = vmatpush.bf16.msra.mxu0 0
    %1385 = vmatpush.bf16.msra.mxu0 0
    %1386 = vmatpush.bf16.msra.mxu0 0
    %1387 = vmatpush.bf16.msra.mxu0 0
    %1388 = vmatpush.bf16.msra.mxu0 %v1379
    %1389 = vmatmul.bf16.gmra.mxu0 %v1376
    %v1390 = vpop.f32.mrf.mxu0
    %v1391 = vadd.f32 0.0, %v1390
    %v1392 = vpop.f32.mrf.mxu0
    %1393 = vdwg.mxu0
    %1394 = vrot.lane.b32.xlu0 %v1109, 64
    %v1395 = vpop.permute.xlu0 %1394
    %v1397 = vsel %vm175, %v1286, 0
    %v1400 = vsel %vm473, %v1395, 0
    %1402 = vmatpush.bf16.msra.mxu0 0
    %1403 = vmatpush.bf16.msra.mxu0 0
    %1404 = vmatpush.bf16.msra.mxu0 0
    %1405 = vmatpush.bf16.msra.mxu0 0
    %1406 = vmatpush.bf16.msra.mxu0 0
    %1407 = vmatpush.bf16.msra.mxu0 0
    %1408 = vmatpush.bf16.msra.mxu0 0
    %1409 = vmatpush.bf16.msra.mxu0 %v1400
    %1410 = vmatmul.bf16.gmra.mxu0 %v1397
    %v1411 = vpop.f32.mrf.mxu0
    %v1412 = vadd.f32 0.0, %v1411
    %v1413 = vpop.f32.mrf.mxu0
    %1414 = vdwg.mxu0
    %1415 = vrot.lane.b32.xlu0 %v1132, 64
    %v1416 = vpop.permute.xlu0 %1415
    %v1418 = vsel %vm175, %v1287, 0
    %v1421 = vsel %vm473, %v1416, 0
    %1423 = vmatpush.bf16.msra.mxu0 0
    %1424 = vmatpush.bf16.msra.mxu0 0
    %1425 = vmatpush.bf16.msra.mxu0 0
    %1426 = vmatpush.bf16.msra.mxu0 0
    %1427 = vmatpush.bf16.msra.mxu0 0
    %1428 = vmatpush.bf16.msra.mxu0 0
    %1429 = vmatpush.bf16.msra.mxu0 0
    %1430 = vmatpush.bf16.msra.mxu0 %v1421
    %1431 = vmatmul.bf16.gmra.mxu0 %v1418
    %v1432 = vpop.f32.mrf.mxu0
    %v1433 = vadd.f32 0.0, %v1432
    %v1434 = vpop.f32.mrf.mxu0
    %1435 = vdwg.mxu0
    %1436 = vrot.lane.b32.xlu0 %v1155, 64
    %v1437 = vpop.permute.xlu0 %1436
    %v1439 = vsel %vm175, %v1288, 0
    %v1442 = vsel %vm473, %v1437, 0
    %1444 = vmatpush.bf16.msra.mxu0 0
    %1445 = vmatpush.bf16.msra.mxu0 0
    %1446 = vmatpush.bf16.msra.mxu0 0
    %1447 = vmatpush.bf16.msra.mxu0 0
    %1448 = vmatpush.bf16.msra.mxu0 0
    %1449 = vmatpush.bf16.msra.mxu0 0
    %1450 = vmatpush.bf16.msra.mxu0 0
    %1451 = vmatpush.bf16.msra.mxu0 %v1442
    %1452 = vmatmul.bf16.gmra.mxu0 %v1439
    %v1453 = vpop.f32.mrf.mxu0
    %v1454 = vadd.f32 0.0, %v1453
    %v1455 = vpop.f32.mrf.mxu0
    %1456 = vdwg.mxu0
    %1459 = vrot.lane.b32.xlu0 %v1349, 8
    %v1460 = vpop.permute.xlu0 %1459
    %1461 = vrot.lane.b32.xlu0 %v1370, 8
    %v1462 = vpop.permute.xlu0 %1461
    %1467 = vrot.lane.b32.xlu0 %v1391, 16
    %v1468 = vpop.permute.xlu0 %1467
    %1469 = vrot.lane.b32.xlu0 %v1412, 16
    %v1470 = vpop.permute.xlu0 %1469
    %1475 = vrot.lane.b32.xlu0 %v1433, 24
    %v1476 = vpop.permute.xlu0 %1475
    %1477 = vrot.lane.b32.xlu0 %v1454, 24
    %v1478 = vpop.permute.xlu0 %1477
    %v1481 = vsel %vm175, %v1307, %v1460
    %v1482 = vsel %vm175, %v1328, %v1462
    %v1483 = vsel %vm663, %v1481, %v1468
    %v1484 = vsel %vm663, %v1482, %v1470
    %v1485 = vsel %vm666, %v1483, %v1476
    %v1486 = vsel %vm666, %v1484, %v1478
    %v1487 = vpack.c.bf16 %v1486, %v1485
    %s1488 = scalar_lea.vmem %s4, 16
    %v1489 = vld [vmem:[%s1488] sm:$0xf]
    %v1490 = vld [vmem:[%s1488 + $0x4] sm:$0xf]
    %v1491 = vld [vmem:[%s1488 + $0x8] sm:$0xf]
    %v1492 = vld [vmem:[%s1488 + $0xc] sm:$0xf]
    %v1493 = vperm.slane %v51, 5
    %v1498 = vunpack.c.l.b16 %v1489
    %v1499 = vunpack.c.l.b16 %v1490
    %v1500 = vunpack.c.l.b16 %v1491
    %v1501 = vunpack.c.l.b16 %v1492
    %v1502 = vpack.c.b16 %v1499, %v1498
    %v1503 = vpack.c.b16 %v1501, %v1500
    %v1507 = vsel %vm62, %v1487, 0
    %1509 = vmatpush.bf16.msra.mxu0 0
    %1510 = vmatpush.bf16.msra.mxu0 0
    %1511 = vmatpush.bf16.msra.mxu0 0
    %1512 = vmatpush.bf16.msra.mxu0 0
    %1513 = vmatpush.bf16.msra.mxu0 0
    %1514 = vmatpush.bf16.msra.mxu0 0
    %1515 = vmatpush.bf16.msra.mxu0 %v1503
    %1516 = vmatpush.bf16.msra.mxu0 %v1502
    %1517 = vmatmul.bf16.gmra.mxu0 %v1507
    %v1518 = vpop.f32.mrf.mxu0
    %v1519 = vadd.f32 %v1493, %v1518
    %v1520 = vpop.f32.mrf.mxu0
    %v1521 = vadd.f32 %v1493, %v1520
    %1522 = vdwg.mxu0
    %v1523 = vadd.f32 %v939, %v1519
    %v1524 = vadd.f32 %v940, %v1521
    %v1525 = vsel %vm62, %v1523, 0.0
    %1526 = vadd.xlane.f32.xlu0 %v1525
    %v1527 = vpop.xlane.xlu0 %1526
    %v1528 = vsel %vm62, %v1524, 0.0
    %1529 = vadd.xlane.f32.xlu0 %v1528
    %v1530 = vpop.xlane.xlu0 %1529
    %v1531 = vmul.f32 %v1527, %v75
    %v1532 = vmul.f32 %v1530, %v75
    %v1533 = vsub.f32 %v1523, %v1531
    %v1534 = vsub.f32 %v1524, %v1532
    %v1535 = vmul.f32 %v1533, %v1533
    %v1536 = vmul.f32 %v1534, %v1534
    %v1537 = vsel %vm62, %v1535, 0.0
    %1538 = vadd.xlane.f32.xlu0 %v1537
    %v1539 = vpop.xlane.xlu0 %1538
    %v1540 = vsel %vm62, %v1536, 0.0
    %1541 = vadd.xlane.f32.xlu0 %v1540
    %v1542 = vpop.xlane.xlu0 %1541
    %v1543 = vmul.f32 %v1539, %v75
    %v1544 = vmul.f32 %v1542, %v75
    %v1545 = vadd.f32 %v1543, 1e-12
    %v1546 = vadd.f32 %v1544, 1e-12
    %v1547 = vrsqrt.pop %v1545
    %v1548 = vmul.f32 %v1547, %v1545
    %v1549 = vmul.f32 %v1548, %v1547
    %v1550 = vmul.f32 0.5, %v1549
    %v1551 = vsub.f32 1.5, %v1550
    %v1552 = vmul.f32 %v1547, %v1551
    %vm1553 = vweird.f32 %v1545
    %vm1554 = vweird.f32 %v1547
    %vm1555 = vmor %vm1553, %vm1554
    %v1556 = vsel %vm1555, %v1547, %v1552
    %v1557 = vrsqrt.pop %v1546
    %v1558 = vmul.f32 %v1557, %v1546
    %v1559 = vmul.f32 %v1558, %v1557
    %v1560 = vmul.f32 0.5, %v1559
    %v1561 = vsub.f32 1.5, %v1560
    %v1562 = vmul.f32 %v1557, %v1561
    %vm1563 = vweird.f32 %v1546
    %vm1564 = vweird.f32 %v1557
    %vm1565 = vmor %vm1563, %vm1564
    %v1566 = vsel %vm1565, %v1557, %v1562
    %v1567 = vmul.f32 %v1533, %v1556
    %v1568 = vmul.f32 %v1534, %v1566
    %v1569 = vperm.slane %v51, 6
    %v1570 = vmul.f32 %v1567, %v1569
    %v1571 = vmul.f32 %v1568, %v1569
    %v1572 = vperm.slane %v51, 7
    %v1573 = vadd.f32 %v1570, %v1572
    %v1574 = vadd.f32 %v1571, %v1572
    %v1575 = vpack.c.bf16 %v1574, %v1573
    %s1576 = scalar_lea.vmem %s5, 16
    %v1577 = vld [vmem:[%s1576] sm:$0xf]
    %v1578 = vld [vmem:[%s1576 + $0x4] sm:$0xf]
    %v1579 = vld [vmem:[%s1576 + $0x8] sm:$0xf]
    %v1580 = vld [vmem:[%s1576 + $0xc] sm:$0xf]
    %v1581 = vperm.slane %v52, 0
    %v1586 = vunpack.c.l.b16 %v1577
    %v1587 = vunpack.c.l.b16 %v1578
    %v1588 = vunpack.c.l.b16 %v1579
    %v1589 = vunpack.c.l.b16 %v1580
    %v1590 = vpack.c.b16 %v1587, %v1586
    %v1591 = vpack.c.b16 %v1589, %v1588
    %v1595 = vsel %vm62, %v1575, 0
    %1597 = vmatpush.bf16.msra.mxu0 0
    %1598 = vmatpush.bf16.msra.mxu0 0
    %1599 = vmatpush.bf16.msra.mxu0 0
    %1600 = vmatpush.bf16.msra.mxu0 0
    %1601 = vmatpush.bf16.msra.mxu0 0
    %1602 = vmatpush.bf16.msra.mxu0 0
    %1603 = vmatpush.bf16.msra.mxu0 %v1591
    %1604 = vmatpush.bf16.msra.mxu0 %v1590
    %1605 = vmatmul.bf16.gmra.mxu0 %v1595
    %v1606 = vpop.f32.mrf.mxu0
    %v1607 = vadd.f32 %v1581, %v1606
    %v1608 = vpop.f32.mrf.mxu0
    %v1609 = vadd.f32 %v1581, %v1608
    %1610 = vdwg.mxu0
    %v1611 = vmul.f32 %v1607, 0.5
    %v1612 = vmul.f32 %v1609, 0.5
    %v1613 = vmul.f32 %v1607, 0.044715
    %v1614 = vmul.f32 %v1609, 0.044715
    %v1615 = vmul.f32 %v1613, %v1607
    %v1616 = vmul.f32 %v1614, %v1609
    %v1617 = vmul.f32 %v1615, %v1607
    %v1618 = vmul.f32 %v1616, %v1609
    %v1619 = vadd.f32 %v1607, %v1617
    %v1620 = vadd.f32 %v1609, %v1618
    %v1621 = vmul.f32 %v1619, 0.7978846
    %v1622 = vmul.f32 %v1620, 0.7978846
    %v1623 = vtanh.pop %v1621
    %v1624 = vtanh.pop %v1622
    %v1625 = vadd.f32 %v1623, 1.0
    %v1626 = vadd.f32 %v1624, 1.0
    %v1627 = vmul.f32 %v1611, %v1625
    %v1628 = vmul.f32 %v1612, %v1626
    %v1629 = vpack.c.bf16 %v1628, %v1627
    %s1630 = scalar_lea.vmem %s6, 64
    %v1631 = vld [vmem:[%s1630] sm:$0xf]
    %v1632 = vld [vmem:[%s1630 + $0x4] sm:$0xf]
    %v1633 = vld [vmem:[%s1630 + $0x8] sm:$0xf]
    %v1634 = vld [vmem:[%s1630 + $0xc] sm:$0xf]
    %v1635 = vld [vmem:[%s1630 + $0x10] sm:$0xf]
    %v1636 = vld [vmem:[%s1630 + $0x14] sm:$0xf]
    %v1637 = vld [vmem:[%s1630 + $0x18] sm:$0xf]
    %v1638 = vld [vmem:[%s1630 + $0x1c] sm:$0xf]
    %v1639 = vld [vmem:[%s1630 + $0x20] sm:$0xf]
    %v1640 = vld [vmem:[%s1630 + $0x24] sm:$0xf]
    %v1641 = vld [vmem:[%s1630 + $0x28] sm:$0xf]
    %v1642 = vld [vmem:[%s1630 + $0x2c] sm:$0xf]
    %v1643 = vld [vmem:[%s1630 + $0x30] sm:$0xf]
    %v1644 = vld [vmem:[%s1630 + $0x34] sm:$0xf]
    %v1645 = vld [vmem:[%s1630 + $0x38] sm:$0xf]
    %v1646 = vld [vmem:[%s1630 + $0x3c] sm:$0xf]
    %v1647 = vperm.slane %v52, 1
    %v1664 = vunpack.c.l.b16 %v1631
    %v1665 = vunpack.c.l.b16 %v1632
    %v1666 = vunpack.c.l.b16 %v1633
    %v1667 = vunpack.c.l.b16 %v1634
    %v1668 = vunpack.c.l.b16 %v1635
    %v1669 = vunpack.c.l.b16 %v1636
    %v1670 = vunpack.c.l.b16 %v1637
    %v1671 = vunpack.c.l.b16 %v1638
    %v1672 = vunpack.c.l.b16 %v1639
    %v1673 = vunpack.c.l.b16 %v1640
    %v1674 = vunpack.c.l.b16 %v1641
    %v1675 = vunpack.c.l.b16 %v1642
    %v1676 = vunpack.c.l.b16 %v1643
    %v1677 = vunpack.c.l.b16 %v1644
    %v1678 = vunpack.c.l.b16 %v1645
    %v1679 = vunpack.c.l.b16 %v1646
    %v1680 = vpack.c.b16 %v1665, %v1664
    %v1681 = vpack.c.b16 %v1667, %v1666
    %v1682 = vpack.c.b16 %v1669, %v1668
    %v1683 = vpack.c.b16 %v1671, %v1670
    %v1684 = vpack.c.b16 %v1673, %v1672
    %v1685 = vpack.c.b16 %v1675, %v1674
    %v1686 = vpack.c.b16 %v1677, %v1676
    %v1687 = vpack.c.b16 %v1679, %v1678
    %1696 = vmatpush.bf16.msra.mxu0 %v1687
    %1697 = vmatpush.bf16.msra.mxu0 %v1686
    %1698 = vmatpush.bf16.msra.mxu0 %v1685
    %1699 = vmatpush.bf16.msra.mxu0 %v1684
    %1700 = vmatpush.bf16.msra.mxu0 %v1683
    %1701 = vmatpush.bf16.msra.mxu0 %v1682
    %1702 = vmatpush.bf16.msra.mxu0 %v1681
    %1703 = vmatpush.bf16.msra.mxu0 %v1680
    %1704 = vmatmul.bf16.gmra.mxu0 %v1629
    %v1705 = vpop.f32.mrf.mxu0
    %v1706 = vadd.f32 %v1647, %v1705
    %v1707 = vpop.f32.mrf.mxu0
    %v1708 = vadd.f32 %v1647, %v1707
    %1709 = vdwg.mxu0
    %v1710 = vadd.f32 %v1573, %v1706
    %v1711 = vadd.f32 %v1574, %v1708
    %v1712 = vsel %vm62, %v1710, 0.0
    %1713 = vadd.xlane.f32.xlu0 %v1712
    %v1714 = vpop.xlane.xlu0 %1713
    %v1715 = vsel %vm62, %v1711, 0.0
    %1716 = vadd.xlane.f32.xlu0 %v1715
    %v1717 = vpop.xlane.xlu0 %1716
    %v1718 = vmul.f32 %v1714, %v75
    %v1719 = vmul.f32 %v1717, %v75
    %v1720 = vsub.f32 %v1710, %v1718
    %v1721 = vsub.f32 %v1711, %v1719
    %v1722 = vmul.f32 %v1720, %v1720
    %v1723 = vmul.f32 %v1721, %v1721
    %v1724 = vsel %vm62, %v1722, 0.0
    %1725 = vadd.xlane.f32.xlu0 %v1724
    %v1726 = vpop.xlane.xlu0 %1725
    %v1727 = vsel %vm62, %v1723, 0.0
    %1728 = vadd.xlane.f32.xlu0 %v1727
    %v1729 = vpop.xlane.xlu0 %1728
    %v1730 = vmul.f32 %v1726, %v75
    %v1731 = vmul.f32 %v1729, %v75
    %v1732 = vadd.f32 %v1730, 1e-12
    %v1733 = vadd.f32 %v1731, 1e-12
    %v1734 = vrsqrt.pop %v1732
    %v1735 = vmul.f32 %v1734, %v1732
    %v1736 = vmul.f32 %v1735, %v1734
    %v1737 = vmul.f32 0.5, %v1736
    %v1738 = vsub.f32 1.5, %v1737
    %v1739 = vmul.f32 %v1734, %v1738
    %vm1740 = vweird.f32 %v1732
    %vm1741 = vweird.f32 %v1734
    %vm1742 = vmor %vm1740, %vm1741
    %v1743 = vsel %vm1742, %v1734, %v1739
    %v1744 = vrsqrt.pop %v1733
    %v1745 = vmul.f32 %v1744, %v1733
    %v1746 = vmul.f32 %v1745, %v1744
    %v1747 = vmul.f32 0.5, %v1746
    %v1748 = vsub.f32 1.5, %v1747
    %v1749 = vmul.f32 %v1744, %v1748
    %vm1750 = vweird.f32 %v1733
    %vm1751 = vweird.f32 %v1744
    %vm1752 = vmor %vm1750, %vm1751
    %v1753 = vsel %vm1752, %v1744, %v1749
    %v1754 = vmul.f32 %v1720, %v1743
    %v1755 = vmul.f32 %v1721, %v1753
    %v1756 = vperm.slane %v52, 2
    %v1757 = vmul.f32 %v1754, %v1756
    %v1758 = vmul.f32 %v1755, %v1756
    %v1759 = vperm.slane %v52, 3
    %v1760 = vadd.f32 %v1757, %v1759
    %v1761 = vadd.f32 %v1758, %v1759
    %v1762 = vpack.c.bf16 %v1760, %v1760
    %v1763 = vpack.c.bf16 %v1761, %v1761
    %v1764 = vld [vmem:[%s7] sm:$0xf]
    %v1765 = vld [vmem:[%s7 + $0x4] sm:$0xf]
    %v1766 = vld [vmem:[%s7 + $0x8] sm:$0xf]
    %v1767 = vld [vmem:[%s7 + $0xc] sm:$0xf]
    %v1768 = vperm.slane %v50, 2
    %v1771 = vunpack.c.l.b16 %v1762
    %v1772 = vunpack.c.l.b16 %v1763
    %v1773 = vrot.slane %v1772, 7
    %vm1774 = vcmask 1041409
    %v1775 = vsel %vm1774, %v1773, %v1771
    %v1776 = vpack.c.b16 %v1775, %v1775
    %v1781 = vunpack.c.l.b16 %v1764
    %v1782 = vunpack.c.l.b16 %v1765
    %v1783 = vunpack.c.l.b16 %v1766
    %v1784 = vunpack.c.l.b16 %v1767
    %v1785 = vpack.c.b16 %v1782, %v1781
    %v1786 = vpack.c.b16 %v1784, %v1783
    %v1790 = vsel %vm62, %v1776, 0
    %1792 = vmatpush.bf16.msra.mxu0 0
    %1793 = vmatpush.bf16.msra.mxu0 0
    %1794 = vmatpush.bf16.msra.mxu0 0
    %1795 = vmatpush.bf16.msra.mxu0 0
    %1796 = vmatpush.bf16.msra.mxu0 0
    %1797 = vmatpush.bf16.msra.mxu0 0
    %1798 = vmatpush.bf16.msra.mxu0 %v1786
    %1799 = vmatpush.bf16.msra.mxu0 %v1785
    %1800 = vmatmul.bf16.gmra.mxu0 %v1790
    %v1801 = vpop.f32.mrf.mxu0
    %v1802 = vadd.f32 %v1768, %v1801
    %v1803 = vpop.f32.mrf.mxu0
    %1804 = vdwg.mxu0
    %v1805 = vtanh.pop %v1802
    %v1806 = vpack.c.bf16 %v1805, %v1805
    %v1807 = vld [vmem:[#allocation2] sm:$0xf]
    %v1808 = vld [vmem:[#allocation2 + $0x4] sm:$0xf]
    %v1809 = vld [vmem:[#allocation2 + $0x8] sm:$0xf]
    %v1810 = vld [vmem:[#allocation2 + $0xc] sm:$0xf]
    %v1811 = vperm.slane %v50, 3
    %v1816 = vunpack.c.l.b16 %v1807
    %v1817 = vunpack.c.l.b16 %v1808
    %v1818 = vunpack.c.l.b16 %v1809
    %v1819 = vunpack.c.l.b16 %v1810
    %v1820 = vpack.c.b16 %v1817, %v1816
    %v1821 = vpack.c.b16 %v1819, %v1818
    %v1825 = vsel %vm62, %v1806, 0
    %1827 = vmatpush.bf16.msra.mxu0 0
    %1828 = vmatpush.bf16.msra.mxu0 0
    %1829 = vmatpush.bf16.msra.mxu0 0
    %1830 = vmatpush.bf16.msra.mxu0 0
    %1831 = vmatpush.bf16.msra.mxu0 0
    %1832 = vmatpush.bf16.msra.mxu0 0
    %1833 = vmatpush.bf16.msra.mxu0 %v1821
    %1834 = vmatpush.bf16.msra.mxu0 %v1820
    %1835 = vmatmul.bf16.gmra.mxu0 %v1825
    %v1836 = vpop.f32.mrf.mxu0
    %v1837 = vadd.f32 %v1811, %v1836
    %v1838 = vpop.f32.mrf.mxu0
    %1839 = vdwg.mxu0
    %1840 = vst [vmem:[#allocation5] sm:$0x3] %v1837
    // Predicated region
    $region42: #{tpu_custom_call.1} parent=1 // pred_check
      _
    $region43: #{tpu_custom_call.1} parent=1 // pred_check_branch
      %1842 = sbr.rel (0) target = $region45
    $region44: #{tpu_custom_call.1} parent=1 // pred_region
      %1844 = vsyncadd [#allocation4], 0
      %s1846 = sshll.u32 [#allocation5], 4
      %s1847 = int_to_ptr.vmem [resolvable:$true] %s1846
      %s1848 = sshll.u32 %s9, 4
      %s1849 = int_to_ptr.hbm [resolvable:$true] %s1848
      %1851 = dma.vmem_to_hbm [thread:$0]  %s1847, 32, %s1849, [#allocation4]
    $region45: #{tpu_custom_call.1} parent=1 // pred_fallthru
      _
    // Predicated region
    $region46: #{tpu_custom_call.1} parent=1 // pred_check
      _
    $region47: #{tpu_custom_call.1} parent=1 // pred_check_branch
      %1853 = sbr.rel (0) target = $region49
    $region48: #{tpu_custom_call.1} parent=1 // pred_region
      %1855 = dma.done [#allocation4], 32
    $region49: #{tpu_custom_call.1} parent=1 // pred_fallthru
      _
    %1856 = vsyncpa [#allocation3], 1
    %1857 = vsyncpa [#allocation4], 1

</llo_original>
